<compile_context>
chip_gen: v7x
topology: tpu7x:2x2x1
jax: 0.10.0
libtpu: 0.0.40
codegen_flags: <defaults>
</compile_context>

<pallas_src>
import jax
import jax.numpy as jnp
from jax.experimental import pallas as pl
from jax.experimental.pallas import tpu as pltpu

_BN_EPS = 1e-5
_MIB = 1 << 20


def _make_kernel(resident, n_batch):
    """Build the kernel body. `resident`: hidden activation kept in VMEM."""

    def kernel(x_ref, w1_ref, gamma_ref, beta_ref, w2_ref, b2_ref, o_ref, *scratch):
        if resident:
            h_ref, ssum_ref, ssq_ref, scale_ref, shift_ref = scratch
        else:
            ssum_ref, ssq_ref, scale_ref, shift_ref = scratch

        phase = pl.program_id(0)     # 0: Linear1 + batch stats, 1: BN+ReLU+Linear2
        tile = pl.program_id(1)      # batch-tile index
        tm = x_ref.shape[0]
        row = pl.multiple_of(tile * tm, tm)

        @pl.when(phase == 0)
        def _pass1():
            @pl.when(tile == 0)
            def _init():
                ssum_ref[...] = jnp.zeros_like(ssum_ref)
                ssq_ref[...] = jnp.zeros_like(ssq_ref)

            # Linear1 (bias dropped: it cancels under training-mode BatchNorm).
            h = jnp.dot(x_ref[...], w1_ref[...],
                        preferred_element_type=jnp.float32)        # (TM, mid) f32
            ssum_ref[...] += jnp.sum(h, axis=0, keepdims=True)
            ssq_ref[...] += jnp.sum(h * h, axis=0, keepdims=True)
            if resident:
                h_ref[pl.ds(row, tm), :] = h.astype(h_ref.dtype)   # bf16 stash

        @pl.when(phase == 1)
        def _pass2():
            @pl.when(tile == 0)
            def _fold_bn():
                inv_n = jnp.float32(1.0 / n_batch)
                mean = ssum_ref[...] * inv_n
                var = ssq_ref[...] * inv_n - mean * mean   # biased var (train fwd)
                scale = gamma_ref[...] * jax.lax.rsqrt(var + _BN_EPS)
                scale_ref[...] = scale
                shift_ref[...] = beta_ref[...] - mean * scale

            if resident:
                h = h_ref[pl.ds(row, tm), :].astype(jnp.float32)
            else:
                # Hidden activation did not fit VMEM: recompute Linear1.
                h = jnp.dot(x_ref[...], w1_ref[...],
                            preferred_element_type=jnp.float32)
            a = jnp.maximum(h * scale_ref[...] + shift_ref[...], 0.0)  # BN + ReLU
            out = jnp.dot(a.astype(w2_ref.dtype), w2_ref[...],
                          preferred_element_type=jnp.float32)
            o_ref[...] = (out + b2_ref[...]).astype(o_ref.dtype)

    return kernel


def _vmem_capacity_bytes():
    try:
        cap = int(pltpu.get_tpu_info().vmem_capacity_bytes)
        if cap > 0:
            return cap
    except Exception:
        pass
    return 64 * _MIB   # conservative default: v7x has 64 MiB per TensorCore


def _working_set_bytes(n, in_dim, mid_dim, out_dim, tm, resident, out_itemsize,
                       weight_bufs=1):
    ws = 0
    if resident:
        ws += n * mid_dim * 2                                       # bf16 hidden scratch
    ws += weight_bufs * (in_dim * mid_dim + mid_dim * out_dim) * 2  # bf16 weights
    ws += 2 * tm * in_dim * 2                                       # x tiles (double-buf)
    ws += 2 * tm * out_dim * out_itemsize                           # out tiles (double-buf)
    ws += 8 * (7 * mid_dim + 2 * out_dim) * 4                       # per-feature rows (padded)
    ws += 2 * _MIB                                                  # compiler-internal slack
    return ws


def _pick_block_m(n, in_dim, mid_dim, out_dim, resident, out_itemsize, budget):
    # Multiples of 16 keep the bf16 hidden-scratch stores sublane-aligned;
    # largest-first amortizes the ~0.35 us/grid-step overhead and keeps the
    # MXU fed with long uninterrupted runs (256-aligned where possible).
    cands = [c for c in (2048, 1024, 512, 256, 128, 64, 32, 16) if n % c == 0]
    if not cands:
        cands = [n]                     # ragged / tiny batch: single full tile
    fits = [c for c in cands
            if _working_set_bytes(n, in_dim, mid_dim, out_dim, c, resident,
                                  out_itemsize) <= budget]
    if not fits:
        return None
    multi = [c for c in fits if n // c >= 2]   # keep >=2 tiles so DMA overlaps compute
    return multi[0] if multi else fits[0]


def prediction_mlp(x, w1, b1, gamma, beta, w2, b2, *, block_m=None,
                   out_dtype=jnp.float32):
    """SimSiam PredictionMLP forward (training-mode BatchNorm1d).

    x: (N, in_dim) f32 -> (N, out_dim) out_dtype.
    """
    del b1   # cancels exactly under training-mode BatchNorm1d
    n, in_dim = x.shape
    mid_dim = w1.shape[1]
    out_dim = w2.shape[1]
    out_itemsize = jnp.dtype(out_dtype).itemsize

    # Per-generation VMEM budget with ~20% headroom for compiler scratch.
    vmem_cap = _vmem_capacity_bytes()
    vmem_budget = max(16 * _MIB, min(vmem_cap - 12 * _MIB, int(vmem_cap * 0.8)))

    if block_m is not None:
        assert n % block_m == 0, f"batch {n} must be divisible by block_m {block_m}"
        tm = block_m
        resident = _working_set_bytes(n, in_dim, mid_dim, out_dim, tm, True,
                                      out_itemsize) <= vmem_budget
    else:
        tm = _pick_block_m(n, in_dim, mid_dim, out_dim, True, out_itemsize,
                           vmem_budget)
        resident = tm is not None
        if not resident:
            # Resident hidden activation doesn't fit: recompute Linear1 in
            # phase 1 (x streamed twice) rather than spilling h to HBM.
            tm = _pick_block_m(n, in_dim, mid_dim, out_dim, False, out_itemsize,
                               vmem_budget)
            if tm is None:
                raise ValueError("PredictionMLP: weights + one batch tile exceed "
                                 "the VMEM budget; reduce model/batch size.")
    nt = n // tm

    # bf16 matmul operands (MXU peak path, half the DMA bytes); stats stay f32.
    x_bf = x.astype(jnp.bfloat16)
    w1_bf = w1.astype(jnp.bfloat16)
    w2_bf = w2.astype(jnp.bfloat16)
    gamma2 = gamma.reshape(1, mid_dim).astype(jnp.float32)
    beta2 = beta.reshape(1, mid_dim).astype(jnp.float32)
    b2_2 = b2.reshape(1, out_dim).astype(jnp.float32)

    lin1_passes = 1 if resident else 2
    cost = pl.CostEstimate(
        flops=2 * n * (lin1_passes * in_dim * mid_dim + mid_dim * out_dim),
        transcendentals=mid_dim,
        bytes_accessed=(lin1_passes * x_bf.size * 2
                        + (w1_bf.size + w2_bf.size) * 2
                        + (gamma2.size + beta2.size + b2_2.size) * 4
                        + n * out_dim * out_itemsize),
    )

    if resident:
        # Park x on the last tile during phase 1 -> no redundant re-DMA.
        x_map = lambda p, t: (t * (1 - p) + (nt - 1) * p, 0)
        scratch = [pltpu.VMEM((n, mid_dim), jnp.bfloat16)]   # resident hidden act.
    else:
        x_map = lambda p, t: (t, 0)                          # re-stream x in phase 1
        scratch = []
    scratch += [pltpu.VMEM((1, mid_dim), jnp.float32),       # sum(h)
                pltpu.VMEM((1, mid_dim), jnp.float32),       # sum(h*h)
                pltpu.VMEM((1, mid_dim), jnp.float32),       # folded BN scale
                pltpu.VMEM((1, mid_dim), jnp.float32)]       # folded BN shift
    scratch = tuple(scratch)

    # Don't request the full physical VMEM: cap at (conservative working set,
    # including a 2nd weight buffer for the no-Buffered(1) fallback) + margin,
    # clamped to the per-generation budget.
    needed = (_working_set_bytes(n, in_dim, mid_dim, out_dim, tm, resident,
                                 out_itemsize, weight_bufs=2) + 8 * _MIB)
    vmem_limit = min(vmem_budget, max(32 * _MIB, needed))

    kernel = _make_kernel(resident, n)

    def build(single_buffer_weights):
        const = ({"pipeline_mode": pl.Buffered(1)} if single_buffer_weights else {})
        grid_spec = pltpu.PrefetchScalarGridSpec(
            num_scalar_prefetch=0,
            grid=(2, nt),
            in_specs=[
                pl.BlockSpec((tm, in_dim), x_map),
                pl.BlockSpec((in_dim, mid_dim), lambda p, t: (0, 0), **const),   # w1
                pl.BlockSpec((1, mid_dim), lambda p, t: (0, 0), **const),        # gamma
                pl.BlockSpec((1, mid_dim), lambda p, t: (0, 0), **const),        # beta
                pl.BlockSpec((mid_dim, out_dim), lambda p, t: (0, 0), **const),  # w2
                pl.BlockSpec((1, out_dim), lambda p, t: (0, 0), **const),        # b2
            ],
            # out: parked on block 0 during phase 0 (never written there), then
            # walks batch tiles in phase 1 -> only valid data is flushed to HBM.
            out_specs=pl.BlockSpec((tm, out_dim), lambda p, t: (t * p, 0)),
            scratch_shapes=scratch,
        )
        return pl.pallas_call(
            kernel,
            out_shape=jax.ShapeDtypeStruct((n, out_dim), out_dtype),
            grid_spec=grid_spec,
            compiler_params=pltpu.CompilerParams(
                # Phase axis is sequential; tile axis carries the BN-stats /
                # hidden-scratch carry, so both stay 'arbitrary'.
                dimension_semantics=("arbitrary", "arbitrary"),
                vmem_limit_bytes=vmem_limit,
            ),
            cost_estimate=cost,
        )

    args = (x_bf, w1_bf, gamma2, beta2, w2_bf, b2_2)
    try:
        return build(True)(*args)
    except Exception:
        # TODO(synk): drop this fallback once pl.Buffered(1) single-buffering of
        # constant-index operands is supported on all deployed jax versions.
        return build(False)(*args)


def init_params(key, in_dim, mid_dim, out_dim):
    """Deterministic parameter init mimicking PyTorch defaults (uniform fan-in)."""
    k1, k2, k3, k4 = jax.random.split(key, 4)
    bound1 = 1.0 / jnp.sqrt(in_dim)
    bound2 = 1.0 / jnp.sqrt(mid_dim)
    w1 = jax.random.uniform(k1, (in_dim, mid_dim), jnp.float32, -bound1, bound1)
    b1 = jax.random.uniform(k2, (1, mid_dim), jnp.float32, -bound1, bound1)
    gamma = jnp.ones((mid_dim,), jnp.float32)   # BatchNorm1d weight
    beta = jnp.zeros((mid_dim,), jnp.float32)   # BatchNorm1d bias
    w2 = jax.random.uniform(k3, (mid_dim, out_dim), jnp.float32, -bound2, bound2)
    b2 = jax.random.uniform(k4, (out_dim,), jnp.float32, -bound2, bound2)
    return w1, b1, gamma, beta, w2, b2


if __name__ == "__main__":
    key = jax.random.PRNGKey(0)
    kx, kp, kg, kb = jax.random.split(key, 4)

    batch, in_dim, mid_dim, out_dim = 64, 128, 256, 128
    x = jax.random.normal(kx, (batch, in_dim), jnp.float32)
    w1, b1, gamma, beta, w2, b2 = init_params(kp, in_dim, mid_dim, out_dim)
    # Non-trivial BN affine params so the folded scale/shift path is exercised.
    gamma = 1.0 + 0.1 * jax.random.normal(kg, (mid_dim,), jnp.float32)
    beta = 0.1 * jax.random.normal(kb, (mid_dim,), jnp.float32)

    # block_m=16 -> 4 batch tiles: exercises the two-phase (stats, then
    # BN + second matmul) multi-tile grid structure at a small, layout-friendly
    # test size (full 128-lane output rows, 16-row bf16-aligned tiles).
    out = prediction_mlp(x, w1, b1, gamma, beta, w2, b2, block_m=16)
    out = jax.block_until_ready(out)
    assert out.shape == (batch, out_dim)

    f32, bf16 = jnp.float32, jnp.bfloat16
    hi = jax.lax.Precision.HIGHEST

    # Reference 1: precision-matched (bf16 matmul operands, bf16 hidden
    # storage, b1 dropped) -> tight tolerance.
    xb = x.astype(bf16).astype(f32)
    w1b = w1.astype(bf16).astype(f32)
    w2b = w2.astype(bf16).astype(f32)
    h = jnp.dot(xb, w1b, precision=hi)
    mu = h.mean(0, keepdims=True)
    var = (h * h).mean(0, keepdims=True) - mu * mu
    scale = gamma[None, :] * jax.lax.rsqrt(var + _BN_EPS)
    shift = beta[None, :] - mu * scale
    hb = h.astype(bf16).astype(f32)
    a = jnp.maximum(hb * scale + shift, 0.0)
    ref_matched = jnp.dot(a.astype(bf16).astype(f32), w2b, precision=hi) + b2[None, :]
    err1 = float(jnp.max(jnp.abs(out - ref_matched)))
    assert jnp.allclose(out, ref_matched, atol=2e-3, rtol=2e-3), f"matched max_err={err1}"

    # Reference 2: full-f32 PyTorch-equivalent forward (keeps b1: it must
    # cancel under training-mode BatchNorm).  Looser tolerance: the remaining
    # gap is purely bf16 operand / hidden-storage rounding in the kernel.
    hf = x @ w1 + b1
    muf = hf.mean(0, keepdims=True)
    varf = ((hf - muf) ** 2).mean(0, keepdims=True)
    af = jnp.maximum((hf - muf) / jnp.sqrt(varf + _BN_EPS) * gamma[None, :]
                     + beta[None, :], 0.0)
    ref_f32 = af @ w2 + b2[None, :]
    err2 = float(jnp.max(jnp.abs(out - ref_f32)))
    assert jnp.allclose(out, ref_f32, atol=5e-2, rtol=5e-2), f"f32 max_err={err2}"

    print("KERNEL_OK")
</pallas_src>

<mosaic_0001>
module attributes {stable_mosaic.version = 11 : i64} {
  func.func @kernel(%arg0: i32, %arg1: i32, %arg2: memref<16x128xbf16, #tpu.memory_space<vmem>>, %arg3: memref<128x256xbf16, #tpu.memory_space<vmem>>, %arg4: memref<1x256xf32, #tpu.memory_space<vmem>>, %arg5: memref<1x256xf32, #tpu.memory_space<vmem>>, %arg6: memref<256x128xbf16, #tpu.memory_space<vmem>>, %arg7: memref<1x128xf32, #tpu.memory_space<vmem>>, %arg8: memref<16x128xf32, #tpu.memory_space<vmem>>, %arg9: memref<64x256xbf16, #tpu.memory_space<vmem>>, %arg10: memref<1x256xf32, #tpu.memory_space<vmem>>, %arg11: memref<1x256xf32, #tpu.memory_space<vmem>>, %arg12: memref<1x256xf32, #tpu.memory_space<vmem>>, %arg13: memref<1x256xf32, #tpu.memory_space<vmem>>) attributes {dimension_semantics = [#tpu.dimension_semantics<arbitrary>, #tpu.dimension_semantics<arbitrary>], iteration_bounds = array<i64: 2, 4>, scalar_prefetch = 0 : i64, scratch_operands = 5 : i64, tpu.core_type = #tpu.core_type<tc>, window_params = [{transform_indices = @transform_0, window_bounds = array<i64: 16, 128>}, {pipeline_mode = #tpu.pipeline_mode<synchronous>, transform_indices = @transform_1, window_bounds = array<i64: 128, 256>}, {pipeline_mode = #tpu.pipeline_mode<synchronous>, transform_indices = @transform_2, window_bounds = array<i64: 1, 256>}, {pipeline_mode = #tpu.pipeline_mode<synchronous>, transform_indices = @transform_3, window_bounds = array<i64: 1, 256>}, {pipeline_mode = #tpu.pipeline_mode<synchronous>, transform_indices = @transform_4, window_bounds = array<i64: 256, 128>}, {pipeline_mode = #tpu.pipeline_mode<synchronous>, transform_indices = @transform_5, window_bounds = array<i64: 1, 128>}, {transform_indices = @transform_6, window_bounds = array<i64: 16, 128>}]} {
    %c16_i32 = arith.constant 16 : i32
    %0 = arith.muli %arg1, %c16_i32 : i32
    %1 = tpu.assume_multiple %0, 16 : i32
    %c0_i32 = arith.constant 0 : i32
    %2 = arith.cmpi eq, %arg0, %c0_i32 : i32
    %3 = arith.extui %2 : i1 to i32
    %c0_i32_0 = arith.constant 0 : i32
    %4 = arith.cmpi ne, %3, %c0_i32_0 : i32
    scf.if %4 {
      %c0_i32_2 = arith.constant 0 : i32
      %8 = arith.cmpi eq, %arg1, %c0_i32_2 : i32
      %9 = arith.extui %8 : i1 to i32
      %c0_i32_3 = arith.constant 0 : i32
      %10 = arith.cmpi ne, %9, %c0_i32_3 : i32
      scf.if %10 {
        %cst_18 = arith.constant 0.000000e+00 : f32
        %28 = vector.broadcast %cst_18 : f32 to vector<1x256xf32>
        %c0_19 = arith.constant 0 : index
        %c0_20 = arith.constant 0 : index
        %29 = vector.load %arg10[%c0_19, %c0_20] : memref<1x256xf32, #tpu.memory_space<vmem>>, vector<1x256xf32>
        tpu.vector_store %arg10[%c0_19, %c0_20], %28 {strides = array<i32>} : memref<1x256xf32, #tpu.memory_space<vmem>>, vector<1x256xf32>,
        %cst_21 = arith.constant 0.000000e+00 : f32
        %30 = vector.broadcast %cst_21 : f32 to vector<1x256xf32>
        %c0_22 = arith.constant 0 : index
        %c0_23 = arith.constant 0 : index
        %31 = vector.load %arg11[%c0_22, %c0_23] : memref<1x256xf32, #tpu.memory_space<vmem>>, vector<1x256xf32>
        tpu.vector_store %arg11[%c0_22, %c0_23], %30 {strides = array<i32>} : memref<1x256xf32, #tpu.memory_space<vmem>>, vector<1x256xf32>,
      } else {
      }
      %c0 = arith.constant 0 : index
      %c0_4 = arith.constant 0 : index
      %11 = vector.load %arg2[%c0, %c0_4] : memref<16x128xbf16, #tpu.memory_space<vmem>>, vector<16x128xbf16>
      %c0_5 = arith.constant 0 : index
      %c0_6 = arith.constant 0 : index
      %12 = vector.load %arg3[%c0_5, %c0_6] : memref<128x256xbf16, #tpu.memory_space<vmem>>, vector<128x256xbf16>
      %cst = arith.constant dense<0.000000e+00> : vector<16x256xf32>
      %13 = tpu.matmul %11, %12, %cst {dimension_numbers = #tpu.dot_dimension_numbers<[1], [0], [0], [1], [0, 0, 1, 1], [], []>} : vector<16x128xbf16>, vector<128x256xbf16>, vector<16x256xf32> -> vector<16x256xf32>
      %c0_7 = arith.constant 0 : index
      %c0_8 = arith.constant 0 : index
      %14 = vector.load %arg10[%c0_7, %c0_8] : memref<1x256xf32, #tpu.memory_space<vmem>>, vector<1x256xf32>
      %cst_9 = arith.constant dense<0.000000e+00> : vector<256xf32>
      %15 = vector.multi_reduction <add>, %13, %cst_9 [0] : vector<16x256xf32> to vector<256xf32>
      %16 = vector.shape_cast %15 : vector<256xf32> to vector<1x256xf32>
      %17 = arith.addf %14, %16 : vector<1x256xf32>
      %c0_10 = arith.constant 0 : index
      %c0_11 = arith.constant 0 : index
      %18 = vector.load %arg10[%c0_10, %c0_11] : memref<1x256xf32, #tpu.memory_space<vmem>>, vector<1x256xf32>
      tpu.vector_store %arg10[%c0_10, %c0_11], %17 {strides = array<i32>} : memref<1x256xf32, #tpu.memory_space<vmem>>, vector<1x256xf32>,
      %c0_12 = arith.constant 0 : index
      %c0_13 = arith.constant 0 : index
      %19 = vector.load %arg11[%c0_12, %c0_13] : memref<1x256xf32, #tpu.memory_space<vmem>>, vector<1x256xf32>
      %20 = arith.mulf %13, %13 : vector<16x256xf32>
      %cst_14 = arith.constant dense<0.000000e+00> : vector<256xf32>
      %21 = vector.multi_reduction <add>, %20, %cst_14 [0] : vector<16x256xf32> to vector<256xf32>
      %22 = vector.shape_cast %21 : vector<256xf32> to vector<1x256xf32>
      %23 = arith.addf %19, %22 : vector<1x256xf32>
      %c0_15 = arith.constant 0 : index
      %c0_16 = arith.constant 0 : index
      %24 = vector.load %arg11[%c0_15, %c0_16] : memref<1x256xf32, #tpu.memory_space<vmem>>, vector<1x256xf32>
      tpu.vector_store %arg11[%c0_15, %c0_16], %23 {strides = array<i32>} : memref<1x256xf32, #tpu.memory_space<vmem>>, vector<1x256xf32>,
      %25 = arith.truncf %13 : vector<16x256xf32> to vector<16x256xbf16>
      %26 = arith.index_cast %1 : i32 to index
      %c0_17 = arith.constant 0 : index
      %27 = vector.load %arg9[%26, %c0_17] : memref<64x256xbf16, #tpu.memory_space<vmem>>, vector<16x256xbf16>
      tpu.vector_store %arg9[%26, %c0_17], %25 {strides = array<i32>} : memref<64x256xbf16, #tpu.memory_space<vmem>>, vector<16x256xbf16>,
    } else {
    }
    %c1_i32 = arith.constant 1 : i32
    %5 = arith.cmpi eq, %arg0, %c1_i32 : i32
    %6 = arith.extui %5 : i1 to i32
    %c0_i32_1 = arith.constant 0 : i32
    %7 = arith.cmpi ne, %6, %c0_i32_1 : i32
    scf.if %7 {
      %c0_i32_2 = arith.constant 0 : i32
      %8 = arith.cmpi eq, %arg1, %c0_i32_2 : i32
      %9 = arith.extui %8 : i1 to i32
      %c0_i32_3 = arith.constant 0 : i32
      %10 = arith.cmpi ne, %9, %c0_i32_3 : i32
      scf.if %10 {
        %c0_15 = arith.constant 0 : index
        %c0_16 = arith.constant 0 : index
        %29 = vector.load %arg10[%c0_15, %c0_16] : memref<1x256xf32, #tpu.memory_space<vmem>>, vector<1x256xf32>
        %cst_17 = arith.constant 1.562500e-02 : f32
        %30 = vector.broadcast %cst_17 : f32 to vector<1x256xf32>
        %31 = arith.mulf %29, %30 : vector<1x256xf32>
        %c0_18 = arith.constant 0 : index
        %c0_19 = arith.constant 0 : index
        %32 = vector.load %arg11[%c0_18, %c0_19] : memref<1x256xf32, #tpu.memory_space<vmem>>, vector<1x256xf32>
        %cst_20 = arith.constant 1.562500e-02 : f32
        %33 = vector.broadcast %cst_20 : f32 to vector<1x256xf32>
        %34 = arith.mulf %32, %33 : vector<1x256xf32>
        %35 = arith.mulf %31, %31 : vector<1x256xf32>
        %36 = arith.subf %34, %35 : vector<1x256xf32>
        %c0_21 = arith.constant 0 : index
        %c0_22 = arith.constant 0 : index
        %37 = vector.load %arg4[%c0_21, %c0_22] : memref<1x256xf32, #tpu.memory_space<vmem>>, vector<1x256xf32>
        %cst_23 = arith.constant 9.99999974E-6 : f32
        %38 = vector.broadcast %cst_23 : f32 to vector<1x256xf32>
        %39 = arith.addf %36, %38 : vector<1x256xf32>
        %40 = math.rsqrt %39 : vector<1x256xf32>
        %41 = arith.mulf %37, %40 : vector<1x256xf32>
        %c0_24 = arith.constant 0 : index
        %c0_25 = arith.constant 0 : index
        %42 = vector.load %arg12[%c0_24, %c0_25] : memref<1x256xf32, #tpu.memory_space<vmem>>, vector<1x256xf32>
        tpu.vector_store %arg12[%c0_24, %c0_25], %41 {strides = array<i32>} : memref<1x256xf32, #tpu.memory_space<vmem>>, vector<1x256xf32>,
        %c0_26 = arith.constant 0 : index
        %c0_27 = arith.constant 0 : index
        %43 = vector.load %arg5[%c0_26, %c0_27] : memref<1x256xf32, #tpu.memory_space<vmem>>, vector<1x256xf32>
        %44 = arith.mulf %31, %41 : vector<1x256xf32>
        %45 = arith.subf %43, %44 : vector<1x256xf32>
        %c0_28 = arith.constant 0 : index
        %c0_29 = arith.constant 0 : index
        %46 = vector.load %arg13[%c0_28, %c0_29] : memref<1x256xf32, #tpu.memory_space<vmem>>, vector<1x256xf32>
        tpu.vector_store %arg13[%c0_28, %c0_29], %45 {strides = array<i32>} : memref<1x256xf32, #tpu.memory_space<vmem>>, vector<1x256xf32>,
      } else {
      }
      %11 = arith.index_cast %1 : i32 to index
      %c0 = arith.constant 0 : index
      %12 = vector.load %arg9[%11, %c0] : memref<64x256xbf16, #tpu.memory_space<vmem>>, vector<16x256xbf16>
      %13 = arith.extf %12 : vector<16x256xbf16> to vector<16x256xf32>
      %c0_4 = arith.constant 0 : index
      %c0_5 = arith.constant 0 : index
      %14 = vector.load %arg12[%c0_4, %c0_5] : memref<1x256xf32, #tpu.memory_space<vmem>>, vector<1x256xf32>
      %15 = vector.broadcast %14 : vector<1x256xf32> to vector<16x256xf32>
      %16 = arith.mulf %13, %15 : vector<16x256xf32>
      %c0_6 = arith.constant 0 : index
      %c0_7 = arith.constant 0 : index
      %17 = vector.load %arg13[%c0_6, %c0_7] : memref<1x256xf32, #tpu.memory_space<vmem>>, vector<1x256xf32>
      %18 = vector.broadcast %17 : vector<1x256xf32> to vector<16x256xf32>
      %19 = arith.addf %16, %18 : vector<16x256xf32>
      %cst = arith.constant 0.000000e+00 : f32
      %20 = vector.broadcast %cst : f32 to vector<16x256xf32>
      %21 = arith.maximumf %19, %20 : vector<16x256xf32>
      %22 = arith.truncf %21 : vector<16x256xf32> to vector<16x256xbf16>
      %c0_8 = arith.constant 0 : index
      %c0_9 = arith.constant 0 : index
      %23 = vector.load %arg6[%c0_8, %c0_9] : memref<256x128xbf16, #tpu.memory_space<vmem>>, vector<256x128xbf16>
      %cst_10 = arith.constant dense<0.000000e+00> : vector<16x128xf32>
      %24 = tpu.matmul %22, %23, %cst_10 {dimension_numbers = #tpu.dot_dimension_numbers<[1], [0], [0], [1], [0, 0, 1, 1], [], []>} : vector<16x256xbf16>, vector<256x128xbf16>, vector<16x128xf32> -> vector<16x128xf32>
      %c0_11 = arith.constant 0 : index
      %c0_12 = arith.constant 0 : index
      %25 = vector.load %arg7[%c0_11, %c0_12] : memref<1x128xf32, #tpu.memory_space<vmem>>, vector<1x128xf32>
      %26 = vector.broadcast %25 : vector<1x128xf32> to vector<16x128xf32>
      %27 = arith.addf %24, %26 : vector<16x128xf32>
      %c0_13 = arith.constant 0 : index
      %c0_14 = arith.constant 0 : index
      %28 = vector.load %arg8[%c0_13, %c0_14] : memref<16x128xf32, #tpu.memory_space<vmem>>, vector<16x128xf32>
      tpu.vector_store %arg8[%c0_13, %c0_14], %27 {strides = array<i32>} : memref<16x128xf32, #tpu.memory_space<vmem>>, vector<16x128xf32>,
    } else {
    }
    return
  }
  func.func @transform_0(%arg0: i32, %arg1: i32) -> (i32, i32) {
    %c1_i32 = arith.constant 1 : i32
    %0 = arith.subi %c1_i32, %arg0 : i32
    %1 = arith.muli %arg1, %0 : i32
    %c3_i32 = arith.constant 3 : i32
    %2 = arith.muli %c3_i32, %arg0 : i32
    %3 = arith.addi %1, %2 : i32
    %c0_i32 = arith.constant 0 : i32
    %c0_i32_0 = arith.constant 0 : i32
    return %3, %c0_i32 : i32, i32
  }
  func.func @transform_1(%arg0: i32, %arg1: i32) -> (i32, i32) {
    %c0_i32 = arith.constant 0 : i32
    %c0_i32_0 = arith.constant 0 : i32
    %c0_i32_1 = arith.constant 0 : i32
    return %c0_i32, %c0_i32_0 : i32, i32
  }
  func.func @transform_2(%arg0: i32, %arg1: i32) -> (i32, i32) {
    %c0_i32 = arith.constant 0 : i32
    %c0_i32_0 = arith.constant 0 : i32
    %c0_i32_1 = arith.constant 0 : i32
    return %c0_i32, %c0_i32_0 : i32, i32
  }
  func.func @transform_3(%arg0: i32, %arg1: i32) -> (i32, i32) {
    %c0_i32 = arith.constant 0 : i32
    %c0_i32_0 = arith.constant 0 : i32
    %c0_i32_1 = arith.constant 0 : i32
    return %c0_i32, %c0_i32_0 : i32, i32
  }
  func.func @transform_4(%arg0: i32, %arg1: i32) -> (i32, i32) {
    %c0_i32 = arith.constant 0 : i32
    %c0_i32_0 = arith.constant 0 : i32
    %c0_i32_1 = arith.constant 0 : i32
    return %c0_i32, %c0_i32_0 : i32, i32
  }
  func.func @transform_5(%arg0: i32, %arg1: i32) -> (i32, i32) {
    %c0_i32 = arith.constant 0 : i32
    %c0_i32_0 = arith.constant 0 : i32
    %c0_i32_1 = arith.constant 0 : i32
    return %c0_i32, %c0_i32_0 : i32, i32
  }
  func.func @transform_6(%arg0: i32, %arg1: i32) -> (i32, i32) {
    %0 = arith.muli %arg1, %arg0 : i32
    %c0_i32 = arith.constant 0 : i32
    %c0_i32_0 = arith.constant 0 : i32
    return %0, %c0_i32 : i32, i32
  }
}

module attributes {stable_mosaic.version = 11 : i64} {
  func.func @kernel(%arg0: i32, %arg1: i32, %arg2: memref<16x128xbf16, #tpu.memory_space<vmem>>, %arg3: memref<128x256xbf16, #tpu.memory_space<vmem>>, %arg4: memref<1x256xf32, #tpu.memory_space<vmem>>, %arg5: memref<1x256xf32, #tpu.memory_space<vmem>>, %arg6: memref<256x128xbf16, #tpu.memory_space<vmem>>, %arg7: memref<1x128xf32, #tpu.memory_space<vmem>>, %arg8: memref<16x128xf32, #tpu.memory_space<vmem>>, %arg9: memref<64x256xbf16, #tpu.memory_space<vmem>>, %arg10: memref<1x256xf32, #tpu.memory_space<vmem>>, %arg11: memref<1x256xf32, #tpu.memory_space<vmem>>, %arg12: memref<1x256xf32, #tpu.memory_space<vmem>>, %arg13: memref<1x256xf32, #tpu.memory_space<vmem>>) attributes {dimension_semantics = [#tpu.dimension_semantics<arbitrary>, #tpu.dimension_semantics<arbitrary>], iteration_bounds = array<i64: 2, 4>, scalar_prefetch = 0 : i64, scratch_operands = 5 : i64, tpu.core_type = #tpu.core_type<tc>, window_params = [{transform_indices = @transform_0, window_bounds = array<i64: 16, 128>}, {pipeline_mode = #tpu.pipeline_mode<synchronous>, transform_indices = @transform_1, window_bounds = array<i64: 128, 256>}, {pipeline_mode = #tpu.pipeline_mode<synchronous>, transform_indices = @transform_2, window_bounds = array<i64: 1, 256>}, {pipeline_mode = #tpu.pipeline_mode<synchronous>, transform_indices = @transform_3, window_bounds = array<i64: 1, 256>}, {pipeline_mode = #tpu.pipeline_mode<synchronous>, transform_indices = @transform_4, window_bounds = array<i64: 256, 128>}, {pipeline_mode = #tpu.pipeline_mode<synchronous>, transform_indices = @transform_5, window_bounds = array<i64: 1, 128>}, {transform_indices = @transform_6, window_bounds = array<i64: 16, 128>}]} {
    %c16_i32 = arith.constant 16 : i32
    %0 = arith.muli %arg1, %c16_i32 : i32
    %1 = tpu.assume_multiple %0, 16 : i32
    %c0_i32 = arith.constant 0 : i32
    %2 = arith.cmpi eq, %arg0, %c0_i32 : i32
    %3 = arith.extui %2 : i1 to i32
    %c0_i32_0 = arith.constant 0 : i32
    %4 = arith.cmpi ne, %3, %c0_i32_0 : i32
    scf.if %4 {
      %c0_i32_2 = arith.constant 0 : i32
      %8 = arith.cmpi eq, %arg1, %c0_i32_2 : i32
      %9 = arith.extui %8 : i1 to i32
      %c0_i32_3 = arith.constant 0 : i32
      %10 = arith.cmpi ne, %9, %c0_i32_3 : i32
      scf.if %10 {
        %cst_18 = arith.constant 0.000000e+00 : f32
        %28 = vector.broadcast %cst_18 : f32 to vector<1x256xf32>
        %c0_19 = arith.constant 0 : index
        %c0_20 = arith.constant 0 : index
        %29 = vector.load %arg10[%c0_19, %c0_20] : memref<1x256xf32, #tpu.memory_space<vmem>>, vector<1x256xf32>
        tpu.vector_store %arg10[%c0_19, %c0_20], %28 {strides = array<i32>} : memref<1x256xf32, #tpu.memory_space<vmem>>, vector<1x256xf32>,
        %cst_21 = arith.constant 0.000000e+00 : f32
        %30 = vector.broadcast %cst_21 : f32 to vector<1x256xf32>
        %c0_22 = arith.constant 0 : index
        %c0_23 = arith.constant 0 : index
        %31 = vector.load %arg11[%c0_22, %c0_23] : memref<1x256xf32, #tpu.memory_space<vmem>>, vector<1x256xf32>
        tpu.vector_store %arg11[%c0_22, %c0_23], %30 {strides = array<i32>} : memref<1x256xf32, #tpu.memory_space<vmem>>, vector<1x256xf32>,
      } else {
      }
      %c0 = arith.constant 0 : index
      %c0_4 = arith.constant 0 : index
      %11 = vector.load %arg2[%c0, %c0_4] : memref<16x128xbf16, #tpu.memory_space<vmem>>, vector<16x128xbf16>
      %c0_5 = arith.constant 0 : index
      %c0_6 = arith.constant 0 : index
      %12 = vector.load %arg3[%c0_5, %c0_6] : memref<128x256xbf16, #tpu.memory_space<vmem>>, vector<128x256xbf16>
      %cst = arith.constant dense<0.000000e+00> : vector<16x256xf32>
      %13 = tpu.matmul %11, %12, %cst {dimension_numbers = #tpu.dot_dimension_numbers<[1], [0], [0], [1], [0, 0, 1, 1], [], []>} : vector<16x128xbf16>, vector<128x256xbf16>, vector<16x256xf32> -> vector<16x256xf32>
      %c0_7 = arith.constant 0 : index
      %c0_8 = arith.constant 0 : index
      %14 = vector.load %arg10[%c0_7, %c0_8] : memref<1x256xf32, #tpu.memory_space<vmem>>, vector<1x256xf32>
      %cst_9 = arith.constant dense<0.000000e+00> : vector<256xf32>
      %15 = vector.multi_reduction <add>, %13, %cst_9 [0] : vector<16x256xf32> to vector<256xf32>
      %16 = vector.shape_cast %15 : vector<256xf32> to vector<1x256xf32>
      %17 = arith.addf %14, %16 : vector<1x256xf32>
      %c0_10 = arith.constant 0 : index
      %c0_11 = arith.constant 0 : index
      %18 = vector.load %arg10[%c0_10, %c0_11] : memref<1x256xf32, #tpu.memory_space<vmem>>, vector<1x256xf32>
      tpu.vector_store %arg10[%c0_10, %c0_11], %17 {strides = array<i32>} : memref<1x256xf32, #tpu.memory_space<vmem>>, vector<1x256xf32>,
      %c0_12 = arith.constant 0 : index
      %c0_13 = arith.constant 0 : index
      %19 = vector.load %arg11[%c0_12, %c0_13] : memref<1x256xf32, #tpu.memory_space<vmem>>, vector<1x256xf32>
      %20 = arith.mulf %13, %13 : vector<16x256xf32>
      %cst_14 = arith.constant dense<0.000000e+00> : vector<256xf32>
      %21 = vector.multi_reduction <add>, %20, %cst_14 [0] : vector<16x256xf32> to vector<256xf32>
      %22 = vector.shape_cast %21 : vector<256xf32> to vector<1x256xf32>
      %23 = arith.addf %19, %22 : vector<1x256xf32>
      %c0_15 = arith.constant 0 : index
      %c0_16 = arith.constant 0 : index
      %24 = vector.load %arg11[%c0_15, %c0_16] : memref<1x256xf32, #tpu.memory_space<vmem>>, vector<1x256xf32>
      tpu.vector_store %arg11[%c0_15, %c0_16], %23 {strides = array<i32>} : memref<1x256xf32, #tpu.memory_space<vmem>>, vector<1x256xf32>,
      %25 = arith.truncf %13 : vector<16x256xf32> to vector<16x256xbf16>
      %26 = arith.index_cast %1 : i32 to index
      %c0_17 = arith.constant 0 : index
      %27 = vector.load %arg9[%26, %c0_17] : memref<64x256xbf16, #tpu.memory_space<vmem>>, vector<16x256xbf16>
      tpu.vector_store %arg9[%26, %c0_17], %25 {strides = array<i32>} : memref<64x256xbf16, #tpu.memory_space<vmem>>, vector<16x256xbf16>,
    } else {
    }
    %c1_i32 = arith.constant 1 : i32
    %5 = arith.cmpi eq, %arg0, %c1_i32 : i32
    %6 = arith.extui %5 : i1 to i32
    %c0_i32_1 = arith.constant 0 : i32
    %7 = arith.cmpi ne, %6, %c0_i32_1 : i32
    scf.if %7 {
      %c0_i32_2 = arith.constant 0 : i32
      %8 = arith.cmpi eq, %arg1, %c0_i32_2 : i32
      %9 = arith.extui %8 : i1 to i32
      %c0_i32_3 = arith.constant 0 : i32
      %10 = arith.cmpi ne, %9, %c0_i32_3 : i32
      scf.if %10 {
        %c0_15 = arith.constant 0 : index
        %c0_16 = arith.constant 0 : index
        %29 = vector.load %arg10[%c0_15, %c0_16] : memref<1x256xf32, #tpu.memory_space<vmem>>, vector<1x256xf32>
        %cst_17 = arith.constant 1.562500e-02 : f32
        %30 = vector.broadcast %cst_17 : f32 to vector<1x256xf32>
        %31 = arith.mulf %29, %30 : vector<1x256xf32>
        %c0_18 = arith.constant 0 : index
        %c0_19 = arith.constant 0 : index
        %32 = vector.load %arg11[%c0_18, %c0_19] : memref<1x256xf32, #tpu.memory_space<vmem>>, vector<1x256xf32>
        %cst_20 = arith.constant 1.562500e-02 : f32
        %33 = vector.broadcast %cst_20 : f32 to vector<1x256xf32>
        %34 = arith.mulf %32, %33 : vector<1x256xf32>
        %35 = arith.mulf %31, %31 : vector<1x256xf32>
        %36 = arith.subf %34, %35 : vector<1x256xf32>
        %c0_21 = arith.constant 0 : index
        %c0_22 = arith.constant 0 : index
        %37 = vector.load %arg4[%c0_21, %c0_22] : memref<1x256xf32, #tpu.memory_space<vmem>>, vector<1x256xf32>
        %cst_23 = arith.constant 9.99999974E-6 : f32
        %38 = vector.broadcast %cst_23 : f32 to vector<1x256xf32>
        %39 = arith.addf %36, %38 : vector<1x256xf32>
        %40 = math.rsqrt %39 : vector<1x256xf32>
        %41 = arith.mulf %37, %40 : vector<1x256xf32>
        %c0_24 = arith.constant 0 : index
        %c0_25 = arith.constant 0 : index
        %42 = vector.load %arg12[%c0_24, %c0_25] : memref<1x256xf32, #tpu.memory_space<vmem>>, vector<1x256xf32>
        tpu.vector_store %arg12[%c0_24, %c0_25], %41 {strides = array<i32>} : memref<1x256xf32, #tpu.memory_space<vmem>>, vector<1x256xf32>,
        %c0_26 = arith.constant 0 : index
        %c0_27 = arith.constant 0 : index
        %43 = vector.load %arg5[%c0_26, %c0_27] : memref<1x256xf32, #tpu.memory_space<vmem>>, vector<1x256xf32>
        %44 = arith.mulf %31, %41 : vector<1x256xf32>
        %45 = arith.subf %43, %44 : vector<1x256xf32>
        %c0_28 = arith.constant 0 : index
        %c0_29 = arith.constant 0 : index
        %46 = vector.load %arg13[%c0_28, %c0_29] : memref<1x256xf32, #tpu.memory_space<vmem>>, vector<1x256xf32>
        tpu.vector_store %arg13[%c0_28, %c0_29], %45 {strides = array<i32>} : memref<1x256xf32, #tpu.memory_space<vmem>>, vector<1x256xf32>,
      } else {
      }
      %11 = arith.index_cast %1 : i32 to index
      %c0 = arith.constant 0 : index
      %12 = vector.load %arg9[%11, %c0] : memref<64x256xbf16, #tpu.memory_space<vmem>>, vector<16x256xbf16>
      %13 = arith.extf %12 : vector<16x256xbf16> to vector<16x256xf32>
      %c0_4 = arith.constant 0 : index
      %c0_5 = arith.constant 0 : index
      %14 = vector.load %arg12[%c0_4, %c0_5] : memref<1x256xf32, #tpu.memory_space<vmem>>, vector<1x256xf32>
      %15 = vector.broadcast %14 : vector<1x256xf32> to vector<16x256xf32>
      %16 = arith.mulf %13, %15 : vector<16x256xf32>
      %c0_6 = arith.constant 0 : index
      %c0_7 = arith.constant 0 : index
      %17 = vector.load %arg13[%c0_6, %c0_7] : memref<1x256xf32, #tpu.memory_space<vmem>>, vector<1x256xf32>
      %18 = vector.broadcast %17 : vector<1x256xf32> to vector<16x256xf32>
      %19 = arith.addf %16, %18 : vector<16x256xf32>
      %cst = arith.constant 0.000000e+00 : f32
      %20 = vector.broadcast %cst : f32 to vector<16x256xf32>
      %21 = arith.maximumf %19, %20 : vector<16x256xf32>
      %22 = arith.truncf %21 : vector<16x256xf32> to vector<16x256xbf16>
      %c0_8 = arith.constant 0 : index
      %c0_9 = arith.constant 0 : index
      %23 = vector.load %arg6[%c0_8, %c0_9] : memref<256x128xbf16, #tpu.memory_space<vmem>>, vector<256x128xbf16>
      %cst_10 = arith.constant dense<0.000000e+00> : vector<16x128xf32>
      %24 = tpu.matmul %22, %23, %cst_10 {dimension_numbers = #tpu.dot_dimension_numbers<[1], [0], [0], [1], [0, 0, 1, 1], [], []>} : vector<16x256xbf16>, vector<256x128xbf16>, vector<16x128xf32> -> vector<16x128xf32>
      %c0_11 = arith.constant 0 : index
      %c0_12 = arith.constant 0 : index
      %25 = vector.load %arg7[%c0_11, %c0_12] : memref<1x128xf32, #tpu.memory_space<vmem>>, vector<1x128xf32>
      %26 = vector.broadcast %25 : vector<1x128xf32> to vector<16x128xf32>
      %27 = arith.addf %24, %26 : vector<16x128xf32>
      %c0_13 = arith.constant 0 : index
      %c0_14 = arith.constant 0 : index
      %28 = vector.load %arg8[%c0_13, %c0_14] : memref<16x128xf32, #tpu.memory_space<vmem>>, vector<16x128xf32>
      tpu.vector_store %arg8[%c0_13, %c0_14], %27 {strides = array<i32>} : memref<16x128xf32, #tpu.memory_space<vmem>>, vector<16x128xf32>,
    } else {
    }
    return
  }
  func.func @transform_0(%arg0: i32, %arg1: i32) -> (i32, i32) {
    %c1_i32 = arith.constant 1 : i32
    %0 = arith.subi %c1_i32, %arg0 : i32
    %1 = arith.muli %arg1, %0 : i32
    %c3_i32 = arith.constant 3 : i32
    %2 = arith.muli %c3_i32, %arg0 : i32
    %3 = arith.addi %1, %2 : i32
    %c0_i32 = arith.constant 0 : i32
    %c0_i32_0 = arith.constant 0 : i32
    return %3, %c0_i32 : i32, i32
  }
  func.func @transform_1(%arg0: i32, %arg1: i32) -> (i32, i32) {
    %c0_i32 = arith.constant 0 : i32
    %c0_i32_0 = arith.constant 0 : i32
    %c0_i32_1 = arith.constant 0 : i32
    return %c0_i32, %c0_i32_0 : i32, i32
  }
  func.func @transform_2(%arg0: i32, %arg1: i32) -> (i32, i32) {
    %c0_i32 = arith.constant 0 : i32
    %c0_i32_0 = arith.constant 0 : i32
    %c0_i32_1 = arith.constant 0 : i32
    return %c0_i32, %c0_i32_0 : i32, i32
  }
  func.func @transform_3(%arg0: i32, %arg1: i32) -> (i32, i32) {
    %c0_i32 = arith.constant 0 : i32
    %c0_i32_0 = arith.constant 0 : i32
    %c0_i32_1 = arith.constant 0 : i32
    return %c0_i32, %c0_i32_0 : i32, i32
  }
  func.func @transform_4(%arg0: i32, %arg1: i32) -> (i32, i32) {
    %c0_i32 = arith.constant 0 : i32
    %c0_i32_0 = arith.constant 0 : i32
    %c0_i32_1 = arith.constant 0 : i32
    return %c0_i32, %c0_i32_0 : i32, i32
  }
  func.func @transform_5(%arg0: i32, %arg1: i32) -> (i32, i32) {
    %c0_i32 = arith.constant 0 : i32
    %c0_i32_0 = arith.constant 0 : i32
    %c0_i32_1 = arith.constant 0 : i32
    return %c0_i32, %c0_i32_0 : i32, i32
  }
  func.func @transform_6(%arg0: i32, %arg1: i32) -> (i32, i32) {
    %0 = arith.muli %arg1, %arg0 : i32
    %c0_i32 = arith.constant 0 : i32
    %c0_i32_0 = arith.constant 0 : i32
    return %0, %c0_i32 : i32, i32
  }
}

</mosaic_0001>

<llo_original>
// kernel: tpu_custom_call.1
$region0: #{tpu_custom_call.1}
  #allocation0 [shape = 'u32[]', space=smem, size = 0x4, offset = 0x4, fixed_abs, tag = 'smem constant byte address 0x4 - core index']
  #allocation1 [shape = 'u32[144,128]{1,0:T(1,128)}', space=vmem, size = 0x12000, scoped, tag = 'internal scratch']
  #allocation2 [shape = 'bf16[64,256]{1,0:T(16,128)(2,1)}', space=vmem, size = 0x8000, scoped, tag = 'scratch operand']
  #allocation3 [shape = 'f32[1,256]{1,0:T(1,128)}', space=vmem, size = 0x400, scoped, tag = 'scratch operand']
  #allocation4 [shape = 'f32[1,256]{1,0:T(1,128)}', space=vmem, size = 0x400, scoped, tag = 'scratch operand']
  #allocation5 [shape = 'f32[1,256]{1,0:T(1,128)}', space=vmem, size = 0x400, scoped, tag = 'scratch operand']
  #allocation6 [shape = 'f32[1,256]{1,0:T(1,128)}', space=vmem, size = 0x400, scoped, tag = 'scratch operand']
  %s0 = inlined_call_operand.hbm [shape: bf16[64,128], index: 0, kind: input, shape index: {}]
  %s1 = inlined_call_operand.hbm [shape: bf16[128,256], index: 1, kind: input, shape index: {}]
  %s2 = inlined_call_operand.vmem [shape: f32[1,256], index: 2, kind: input, shape index: {}]
  %s3 = inlined_call_operand.vmem [shape: f32[1,256], index: 3, kind: input, shape index: {}]
  %s4 = inlined_call_operand.hbm [shape: bf16[256,128], index: 4, kind: input, shape index: {}]
  %s5 = inlined_call_operand.vmem [shape: f32[1,128], index: 5, kind: input, shape index: {}]
  %s6 = inlined_call_operand.hbm [shape: f32[64,128], index: 6, kind: output, shape index: {}]
  %s7 = sld [smem:[#allocation0]]
  $region85: #{tpu_custom_call.1} parent=0
    _
  %s9 = ssub.s32 1, %s7
  %s10 = scalar_select 0, %s9, %s7
  $region1: #{tpu_custom_call.1} parent=0
    #allocation7 [shape = 'u8[8192]{0}', space=vmem, size = 0x2000, scoped, tag = 'input window, operand 0']
    #allocation8 [shape = 's32[2]{0}', space=sflag, size = 0x8, scoped, tag = 'scoped memory for tpu_custom_call.1']
    #allocation9 [shape = 's32[2]{0}', space=sflag, size = 0x8, scoped, tag = 'scoped memory for tpu_custom_call.1']
    #allocation10 [shape = 'u8[65536]{0}', space=vmem, size = 0x10000, scoped, tag = 'input window, operand 1, single buffered']
    #allocation11 [shape = 's32[1]{0}', space=sflag, size = 0x4, scoped, tag = 'scoped memory for tpu_custom_call.1']
    #allocation12 [shape = 'u8[65536]{0}', space=vmem, size = 0x10000, scoped, tag = 'input window, operand 4, single buffered']
    #allocation13 [shape = 'u8[16384]{0}', space=vmem, size = 0x4000, scoped, tag = 'output window, operand 0']
    %11 = vsyncpa [#allocation8], 0
    %s12 = scalar_lea.sflag [#allocation8], 1
    %13 = vsyncpa %s12, 0
    %14 = vsyncpa [#allocation11], 0
    %15 = vsyncpa [#allocation9], 0
    %s16 = scalar_lea.sflag [#allocation9], 1
    %17 = vsyncpa %s16, 0
    loop: start=0, step=1, limit=10
    $region2: #{tpu_custom_call.1} parent=1 // loop_pre_header
      _
    $region3: #{tpu_custom_call.1} parent=1 // loop_header
      %s19 = sphi 0, %s23
      %p20 = scmp.ge.s32.totalorder %s19, 10
      %s26 = sphi 0, %s38
      %s27 = sphi 0, %s34
      %s28 = sphi 0, %s26
      %s29 = sphi 0, %s27
      %s30 = sphi 0, %s28
      %s31 = sphi 0, %s29
      %s49 = sphi 0, %s51
      %s52 = sphi 0, %s49
      %s53 = sphi 0, %s52
      %s69 = sphi 0, %s53
      %s73 = sphi 0, %s73
      %s75 = sphi 0, %s73
      %s76 = sphi 0, %s75
      %s90 = sphi 0, %s76
      %s94 = sphi 0, %s94
      %s96 = sphi 0, %s94
      %s97 = sphi 0, %s96
      %s111 = sphi 0, %s97
      %s115 = sphi 0, %s115
      %s117 = sphi 0, %s115
      %s118 = sphi 0, %s117
      %s132 = sphi 0, %s118
      %s136 = sphi 0, %s136
      %s138 = sphi 0, %s136
      %s139 = sphi 0, %s138
      %s153 = sphi 0, %s139
      %s157 = sphi 0, %s157
      %s159 = sphi 0, %s157
      %s160 = sphi 0, %s159
      %s174 = sphi 0, %s160
      %s182 = sphi 0, %s184
      %s185 = sphi 0, %s182
      %s186 = sphi 0, %s185
      %s202 = sphi 0, %s186
    $region4: #{tpu_custom_call.1} parent=1 // loop_header_branch
      %22 = sbr.rel (%p20) target = $region8
    $region5: #{tpu_custom_call.1} parent=1 // loop_body
      %s24 = ssub.s32 %s19, 1
      %s25 = ssub.s32 %s19, 2
      %s32 = sadd.s32 1, %s27
      %p33 = scmp.ge.s32.totalorder %s32, 4
      %s34 = scalar_select %p33, 0, %s32
      %s35 = sadd.s32 1, %s26
      %s36 = scalar_select %p33, %s35, %s26
      %p37 = scmp.ge.s32.totalorder %s36, 2
      %s38 = scalar_select %p37, 0, %s36
      %s39 = ssub.s32 1, %s26
      %s40 = smul.u32 %s27, %s39
      %s41 = smul.u32 %s26, 3
      %s42 = sadd.s32 %s40, %s41
      %s43 = ssub.s32 1, %s38
      %s44 = smul.u32 %s34, %s43
      %s45 = smul.u32 %s38, 3
      %s46 = sadd.s32 %s44, %s45
      %s47 = ssub.s32 %s42, %s46
      %p48 = scmp.eq.s32.totalorder %s47, 0
      %s50 = sadd.s32 %s49, 1
      %s51 = scalar_select %p48, %s49, %s50
      %p54 = pneg %p48
      %p55 = scmp.eq.s32.totalorder %s19, 7
      %p56 = por %p54, %p55
      %p57 = scmp.ne.s32.totalorder %s49, %s52
      %p58 = scmp.eq.s32.totalorder %s19, 0
      %p59 = por %p57, %p58
      %p60 = scmp.ne.s32.totalorder %s49, %s52
      %p61 = scmp.eq.s32.totalorder %s24, 7
      %p62 = por %p60, %p61
      %p63 = scmp.ne.s32.totalorder %s52, %s53
      %p64 = scmp.eq.s32.totalorder %s24, 0
      %p65 = por %p63, %p64
      %p66 = scmp.ne.s32.totalorder %s52, %s53
      %p67 = scmp.eq.s32.totalorder %s25, 7
      %p68 = por %p66, %p67
      %p70 = scmp.ne.s32.totalorder %s53, %s69
      %p71 = scmp.eq.s32.totalorder %s25, 0
      %p72 = por %p70, %p71
      %s74 = sadd.s32 %s73, 1
      %p77 = scmp.eq.s32.totalorder %s19, 7
      %p78 = scmp.ne.s32.totalorder %s73, %s75
      %p79 = scmp.eq.s32.totalorder %s19, 0
      %p80 = por %p78, %p79
      %p81 = scmp.ne.s32.totalorder %s73, %s75
      %p82 = scmp.eq.s32.totalorder %s24, 7
      %p83 = por %p81, %p82
      %p84 = scmp.ne.s32.totalorder %s75, %s76
      %p85 = scmp.eq.s32.totalorder %s24, 0
      %p86 = por %p84, %p85
      %p87 = scmp.ne.s32.totalorder %s75, %s76
      %p88 = scmp.eq.s32.totalorder %s25, 7
      %p89 = por %p87, %p88
      %p91 = scmp.ne.s32.totalorder %s76, %s90
      %p92 = scmp.eq.s32.totalorder %s25, 0
      %p93 = por %p91, %p92
      %s95 = sadd.s32 %s94, 1
      %p98 = scmp.eq.s32.totalorder %s19, 7
      %p99 = scmp.ne.s32.totalorder %s94, %s96
      %p100 = scmp.eq.s32.totalorder %s19, 0
      %p101 = por %p99, %p100
      %p102 = scmp.ne.s32.totalorder %s94, %s96
      %p103 = scmp.eq.s32.totalorder %s24, 7
      %p104 = por %p102, %p103
      %p105 = scmp.ne.s32.totalorder %s96, %s97
      %p106 = scmp.eq.s32.totalorder %s24, 0
      %p107 = por %p105, %p106
      %p108 = scmp.ne.s32.totalorder %s96, %s97
      %p109 = scmp.eq.s32.totalorder %s25, 7
      %p110 = por %p108, %p109
      %p112 = scmp.ne.s32.totalorder %s97, %s111
      %p113 = scmp.eq.s32.totalorder %s25, 0
      %p114 = por %p112, %p113
      %s116 = sadd.s32 %s115, 1
      %p119 = scmp.eq.s32.totalorder %s19, 7
      %p120 = scmp.ne.s32.totalorder %s115, %s117
      %p121 = scmp.eq.s32.totalorder %s19, 0
      %p122 = por %p120, %p121
      %p123 = scmp.ne.s32.totalorder %s115, %s117
      %p124 = scmp.eq.s32.totalorder %s24, 7
      %p125 = por %p123, %p124
      %p126 = scmp.ne.s32.totalorder %s117, %s118
      %p127 = scmp.eq.s32.totalorder %s24, 0
      %p128 = por %p126, %p127
      %p129 = scmp.ne.s32.totalorder %s117, %s118
      %p130 = scmp.eq.s32.totalorder %s25, 7
      %p131 = por %p129, %p130
      %p133 = scmp.ne.s32.totalorder %s118, %s132
      %p134 = scmp.eq.s32.totalorder %s25, 0
      %p135 = por %p133, %p134
      %s137 = sadd.s32 %s136, 1
      %p140 = scmp.eq.s32.totalorder %s19, 7
      %p141 = scmp.ne.s32.totalorder %s136, %s138
      %p142 = scmp.eq.s32.totalorder %s19, 0
      %p143 = por %p141, %p142
      %p144 = scmp.ne.s32.totalorder %s136, %s138
      %p145 = scmp.eq.s32.totalorder %s24, 7
      %p146 = por %p144, %p145
      %p147 = scmp.ne.s32.totalorder %s138, %s139
      %p148 = scmp.eq.s32.totalorder %s24, 0
      %p149 = por %p147, %p148
      %p150 = scmp.ne.s32.totalorder %s138, %s139
      %p151 = scmp.eq.s32.totalorder %s25, 7
      %p152 = por %p150, %p151
      %p154 = scmp.ne.s32.totalorder %s139, %s153
      %p155 = scmp.eq.s32.totalorder %s25, 0
      %p156 = por %p154, %p155
      %s158 = sadd.s32 %s157, 1
      %p161 = scmp.eq.s32.totalorder %s19, 7
      %p162 = scmp.ne.s32.totalorder %s157, %s159
      %p163 = scmp.eq.s32.totalorder %s19, 0
      %p164 = por %p162, %p163
      %p165 = scmp.ne.s32.totalorder %s157, %s159
      %p166 = scmp.eq.s32.totalorder %s24, 7
      %p167 = por %p165, %p166
      %p168 = scmp.ne.s32.totalorder %s159, %s160
      %p169 = scmp.eq.s32.totalorder %s24, 0
      %p170 = por %p168, %p169
      %p171 = scmp.ne.s32.totalorder %s159, %s160
      %p172 = scmp.eq.s32.totalorder %s25, 7
      %p173 = por %p171, %p172
      %p175 = scmp.ne.s32.totalorder %s160, %s174
      %p176 = scmp.eq.s32.totalorder %s25, 0
      %p177 = por %p175, %p176
      %s178 = smul.u32 %s27, %s26
      %s179 = smul.u32 %s34, %s38
      %s180 = ssub.s32 %s178, %s179
      %p181 = scmp.eq.s32.totalorder %s180, 0
      %s183 = sadd.s32 %s182, 1
      %s184 = scalar_select %p181, %s182, %s183
      %p187 = pneg %p181
      %p188 = scmp.eq.s32.totalorder %s19, 7
      %p189 = por %p187, %p188
      %p190 = scmp.ne.s32.totalorder %s182, %s185
      %p191 = scmp.eq.s32.totalorder %s19, 0
      %p192 = por %p190, %p191
      %p193 = scmp.ne.s32.totalorder %s182, %s185
      %p194 = scmp.eq.s32.totalorder %s24, 7
      %p195 = por %p193, %p194
      %p196 = scmp.ne.s32.totalorder %s185, %s186
      %p197 = scmp.eq.s32.totalorder %s24, 0
      %p198 = por %p196, %p197
      %p199 = scmp.ne.s32.totalorder %s185, %s186
      %p200 = scmp.eq.s32.totalorder %s25, 7
      %p201 = por %p199, %p200
      %p203 = scmp.ne.s32.totalorder %s186, %s202
      %p204 = scmp.eq.s32.totalorder %s25, 0
      %p205 = por %p203, %p204
      %p206 = scmp.le.s32.totalorder 1, %s19
      %p207 = scmp.lt.s32.totalorder %s19, 9
      %p208 = pnand %p206, %p207
      %p209 = pneg %p208
      // Predicated region
      $region9: #{tpu_custom_call.1} parent=5 // pred_check
        _
      $region10: #{tpu_custom_call.1} parent=5 // pred_check_branch
        %211 = sbr.rel (%p208) target = $region12
      $region11: #{tpu_custom_call.1} parent=5 // pred_region
        %s212 = ssub.s32 %s19, 1
        // Predicated region
        $region13: #{tpu_custom_call.1} parent=11 // pred_check
          %p213 = pneg %p86
        $region14: #{tpu_custom_call.1} parent=11 // pred_check_branch
          %215 = sbr.rel (%p213) target = $region16
        $region15: #{tpu_custom_call.1} parent=11 // pred_region
          %s217 = ssub.s32 2048, 2048
          %218 = vsyncadd [#allocation11], %s217
          %s219 = sshll.u32 [#allocation10], 4
          %s220 = int_to_ptr.vmem [resolvable:$true] %s219
          %225 = dma.hbm_to_vmem [thread:$0]  %s1, 2048, %s220, [#allocation11], 128, 128, 8
        $region16: #{tpu_custom_call.1} parent=11 // pred_fallthru
          _
        // Predicated region
        $region17: #{tpu_custom_call.1} parent=11 // pred_check
          %p226 = pneg %p107
        $region18: #{tpu_custom_call.1} parent=11 // pred_check_branch
          %228 = sbr.rel (%p226) target = $region20
        $region19: #{tpu_custom_call.1} parent=11 // pred_region
          _
        $region20: #{tpu_custom_call.1} parent=11 // pred_fallthru
          _
        // Predicated region
        $region21: #{tpu_custom_call.1} parent=11 // pred_check
          %p229 = pneg %p128
        $region22: #{tpu_custom_call.1} parent=11 // pred_check_branch
          %231 = sbr.rel (%p229) target = $region24
        $region23: #{tpu_custom_call.1} parent=11 // pred_region
          _
        $region24: #{tpu_custom_call.1} parent=11 // pred_fallthru
          _
        // Predicated region
        $region25: #{tpu_custom_call.1} parent=11 // pred_check
          %p232 = pneg %p149
        $region26: #{tpu_custom_call.1} parent=11 // pred_check_branch
          %234 = sbr.rel (%p232) target = $region28
        $region27: #{tpu_custom_call.1} parent=11 // pred_region
          %s236 = ssub.s32 2048, 2048
          %237 = vsyncadd [#allocation11], %s236
          %s238 = sshll.u32 [#allocation12], 4
          %s239 = int_to_ptr.vmem [resolvable:$true] %s238
          %244 = dma.hbm_to_vmem [thread:$0]  %s4, 2048, %s239, [#allocation11], 64, 64, 4
        $region28: #{tpu_custom_call.1} parent=11 // pred_fallthru
          _
        // Predicated region
        $region29: #{tpu_custom_call.1} parent=11 // pred_check
          %p245 = pneg %p170
        $region30: #{tpu_custom_call.1} parent=11 // pred_check_branch
          %247 = sbr.rel (%p245) target = $region32
        $region31: #{tpu_custom_call.1} parent=11 // pred_region
          _
        $region32: #{tpu_custom_call.1} parent=11 // pred_fallthru
          _
      $region12: #{tpu_custom_call.1} parent=5 // pred_fallthru
        _
      %p248 = scmp.lt.s32.totalorder %s19, 8
      // Predicated region
      $region33: #{tpu_custom_call.1} parent=5 // pred_check
        %p249 = pneg %p248
      $region34: #{tpu_custom_call.1} parent=5 // pred_check_branch
        %251 = sbr.rel (%p249) target = $region36
      $region35: #{tpu_custom_call.1} parent=5 // pred_region
        // Predicated region
        $region37: #{tpu_custom_call.1} parent=35 // pred_check
          %p252 = pneg %p59
        $region38: #{tpu_custom_call.1} parent=35 // pred_check_branch
          %254 = sbr.rel (%p252) target = $region40
        $region39: #{tpu_custom_call.1} parent=35 // pred_region
          %s255 = sand.u32 %s49, 1
          %s256 = scalar_lea.sflag [#allocation8], %s255
          %s257 = sand.u32 %s49, 1
          %s258 = smul.addr %s257, 8
          %s259 = scalar_lea.vmem [#allocation7], %s258
          %s260 = ssub.s32 1, %s26
          %s261 = smul.u32 %s27, %s260
          %s262 = smul.u32 %s26, 3
          %s263 = sadd.s32 %s261, %s262
          %s264 = smul.u32 2, %s263
          %s266 = ssub.s32 128, 128
          %267 = vsyncadd %s256, %s266
          %s268 = smul.addr %s264, 64
          %s269 = scalar_lea.hbm %s0, %s268
          %s270 = sshll.u32 %s259, 4
          %s271 = int_to_ptr.vmem [resolvable:$true] %s270
          %276 = dma.hbm_to_vmem [thread:$0]  %s269, 128, %s271, %s256, 64, 64, 4
        $region40: #{tpu_custom_call.1} parent=35 // pred_fallthru
          _
      $region36: #{tpu_custom_call.1} parent=5 // pred_fallthru
        _
      %p277 = scmp.le.s32.totalorder 1, %s19
      %p278 = scmp.lt.s32.totalorder %s19, 9
      %p279 = pnand %p277, %p278
      %p280 = pneg %p279
      // Predicated region
      $region41: #{tpu_custom_call.1} parent=5 // pred_check
        _
      $region42: #{tpu_custom_call.1} parent=5 // pred_check_branch
        %282 = sbr.rel (%p279) target = $region44
      $region43: #{tpu_custom_call.1} parent=5 // pred_region
        %s283 = ssub.s32 %s19, 1
        %s284 = sand.u32 %s52, 1
        %s285 = scalar_lea.sflag [#allocation8], %s284
        %s286 = sand.u32 %s52, 1
        %s287 = smul.addr %s286, 8
        %s288 = scalar_lea.vmem [#allocation7], %s287
        // Predicated region
        $region45: #{tpu_custom_call.1} parent=43 // pred_check
          %p289 = pneg %p65
        $region46: #{tpu_custom_call.1} parent=43 // pred_check_branch
          %291 = sbr.rel (%p289) target = $region48
        $region47: #{tpu_custom_call.1} parent=43 // pred_region
          %292 = dma.done %s285, 128
        $region48: #{tpu_custom_call.1} parent=43 // pred_fallthru
          _
        // Predicated region
        $region49: #{tpu_custom_call.1} parent=43 // pred_check
          %p293 = pneg %p86
        $region50: #{tpu_custom_call.1} parent=43 // pred_check_branch
          %295 = sbr.rel (%p293) target = $region52
        $region51: #{tpu_custom_call.1} parent=43 // pred_region
          %296 = dma.done [#allocation11], 2048
        $region52: #{tpu_custom_call.1} parent=43 // pred_fallthru
          _
        // Predicated region
        $region53: #{tpu_custom_call.1} parent=43 // pred_check
          %p297 = pneg %p149
        $region54: #{tpu_custom_call.1} parent=43 // pred_check_branch
          %299 = sbr.rel (%p297) target = $region56
        $region55: #{tpu_custom_call.1} parent=43 // pred_region
          %300 = dma.done [#allocation11], 2048
        $region56: #{tpu_custom_call.1} parent=43 // pred_fallthru
          _
        %s301 = sand.u32 %s52, 1
        %s302 = scalar_lea.sflag [#allocation8], %s301
        %s303 = sand.u32 %s52, 1
        %s304 = smul.addr %s303, 8
        %s305 = scalar_lea.vmem [#allocation7], %s304
        %p306 = pneg %p65
        %p307 = pneg %p62
        %p308 = pneg %p86
        %p309 = pneg %p83
        %p310 = pneg %p107
        %p311 = pneg %p104
        %p312 = pneg %p128
        %p313 = pneg %p125
        %p314 = pneg %p149
        %p315 = pneg %p146
        %p316 = pneg %p170
        %p317 = pneg %p167
        %p318 = pneg %p198
        %p319 = pneg %p195
        %s320 = sand.u32 %s185, 1
        %s321 = scalar_lea.sflag [#allocation9], %s320
        %s322 = sand.u32 %s185, 1
        %s323 = smul.addr %s322, 16
        %s324 = scalar_lea.vmem [#allocation13], %s323
        %s325 = ssub.s32 1, %s28
        %s326 = smul.u32 %s29, %s325
        %s327 = smul.u32 %s28, 3
        %s328 = sadd.s32 %s326, %s327
        %s329 = smul.u32 2, %s328
        %s330 = smul.u32 %s29, %s28
        %s331 = smul.u32 2, %s330
        %s333 = smul.u32 %s29, 16
        %p334 = scmp.eq.s32.totalorder %s28, 0
        // Predicated region
        $region57: #{tpu_custom_call.1} parent=43 // pred_check
          %p335 = pneg %p334
        $region58: #{tpu_custom_call.1} parent=43 // pred_check_branch
          %337 = sbr.rel (%p335) target = $region60
        $region59: #{tpu_custom_call.1} parent=43 // pred_region
          %p338 = scmp.eq.s32.totalorder %s29, 0
          // Predicated region
          $region61: #{tpu_custom_call.1} parent=59 // pred_check
            %p339 = pneg %p338
          $region62: #{tpu_custom_call.1} parent=59 // pred_check_branch
            %341 = sbr.rel (%p339) target = $region64
          $region63: #{tpu_custom_call.1} parent=59 // pred_region
            %v342 = vlaneseq
            %vm343 = vcmp.ge.s32.totalorder %v342, 0
            %vm344 = vcmp.lt.s32.totalorder %v342, 256
            %vm345 = vmand %vm343, %vm344
            %346 = vst.msk [vmem:[#allocation3] sm:$0x3] %vm345, 0.0
            %347 = vst.msk [vmem:[#allocation4] sm:$0x3] %vm345, 0.0
          $region64: #{tpu_custom_call.1} parent=59 // pred_fallthru
            _
          %v348 = vld [vmem:[%s288] sm:$0xf]
          %v349 = vld [vmem:[%s288 + $0x4] sm:$0xf]
          %v350 = vld [vmem:[#allocation10] sm:$0xff]
          %v351 = vld [vmem:[#allocation10 + $0x8] sm:$0xff]
          %v352 = vld [vmem:[#allocation10 + $0x10] sm:$0xff]
          %v353 = vld [vmem:[#allocation10 + $0x18] sm:$0xff]
          %v354 = vld [vmem:[#allocation10 + $0x20] sm:$0xff]
          %v355 = vld [vmem:[#allocation10 + $0x28] sm:$0xff]
          %v356 = vld [vmem:[#allocation10 + $0x30] sm:$0xff]
          %v357 = vld [vmem:[#allocation10 + $0x38] sm:$0xff]
          %v358 = vld [vmem:[#allocation10 + $0x40] sm:$0xff]
          %v359 = vld [vmem:[#allocation10 + $0x48] sm:$0xff]
          %v360 = vld [vmem:[#allocation10 + $0x50] sm:$0xff]
          %v361 = vld [vmem:[#allocation10 + $0x58] sm:$0xff]
          %v362 = vld [vmem:[#allocation10 + $0x60] sm:$0xff]
          %v363 = vld [vmem:[#allocation10 + $0x68] sm:$0xff]
          %v364 = vld [vmem:[#allocation10 + $0x70] sm:$0xff]
          %v365 = vld [vmem:[#allocation10 + $0x78] sm:$0xff]
          %v368 = vunpack.c.l.b16 %v348
          %v369 = vunpack.c.l.b16 %v349
          %v370 = vpack.c.b16 %v369, %v368
          %v388 = vunpack.c.l.b16 %v350
          %v389 = vunpack.c.h.b16 %v350
          %v390 = vunpack.c.l.b16 %v351
          %v391 = vunpack.c.h.b16 %v351
          %v392 = vunpack.c.l.b16 %v352
          %v393 = vunpack.c.h.b16 %v352
          %v394 = vunpack.c.l.b16 %v353
          %v395 = vunpack.c.h.b16 %v353
          %v396 = vunpack.c.l.b16 %v354
          %v397 = vunpack.c.h.b16 %v354
          %v398 = vunpack.c.l.b16 %v355
          %v399 = vunpack.c.h.b16 %v355
          %v400 = vunpack.c.l.b16 %v356
          %v401 = vunpack.c.h.b16 %v356
          %v402 = vunpack.c.l.b16 %v357
          %v403 = vunpack.c.h.b16 %v357
          %v404 = vunpack.c.l.b16 %v358
          %v405 = vunpack.c.h.b16 %v358
          %v406 = vunpack.c.l.b16 %v359
          %v407 = vunpack.c.h.b16 %v359
          %v408 = vunpack.c.l.b16 %v360
          %v409 = vunpack.c.h.b16 %v360
          %v410 = vunpack.c.l.b16 %v361
          %v411 = vunpack.c.h.b16 %v361
          %v412 = vunpack.c.l.b16 %v362
          %v413 = vunpack.c.h.b16 %v362
          %v414 = vunpack.c.l.b16 %v363
          %v415 = vunpack.c.h.b16 %v363
          %v416 = vunpack.c.l.b16 %v364
          %v417 = vunpack.c.h.b16 %v364
          %v418 = vunpack.c.l.b16 %v365
          %v419 = vunpack.c.h.b16 %v365
          %v420 = vpack.c.b16 %v390, %v388
          %v421 = vpack.c.b16 %v391, %v389
          %v422 = vpack.c.b16 %v394, %v392
          %v423 = vpack.c.b16 %v395, %v393
          %v424 = vpack.c.b16 %v398, %v396
          %v425 = vpack.c.b16 %v399, %v397
          %v426 = vpack.c.b16 %v402, %v400
          %v427 = vpack.c.b16 %v403, %v401
          %v428 = vpack.c.b16 %v406, %v404
          %v429 = vpack.c.b16 %v407, %v405
          %v430 = vpack.c.b16 %v410, %v408
          %v431 = vpack.c.b16 %v411, %v409
          %v432 = vpack.c.b16 %v414, %v412
          %v433 = vpack.c.b16 %v415, %v413
          %v434 = vpack.c.b16 %v418, %v416
          %v435 = vpack.c.b16 %v419, %v417
          %452 = vmatprep.subr.bf16.mxu0 %v421
          %453 = vmatpush1.bf16.msra.mxu0 %v420
          %454 = vmatprep.subr.bf16.mxu0 %v423
          %455 = vmatpush1.bf16.msra.mxu0 %v422
          %456 = vmatprep.subr.bf16.mxu0 %v425
          %457 = vmatpush1.bf16.msra.mxu0 %v424
          %458 = vmatprep.subr.bf16.mxu0 %v427
          %459 = vmatpush1.bf16.msra.mxu0 %v426
          %460 = vmatprep.subr.bf16.mxu0 %v429
          %461 = vmatpush1.bf16.msra.mxu0 %v428
          %462 = vmatprep.subr.bf16.mxu0 %v431
          %463 = vmatpush1.bf16.msra.mxu0 %v430
          %464 = vmatprep.subr.bf16.mxu0 %v433
          %465 = vmatpush1.bf16.msra.mxu0 %v432
          %466 = vmatprep.subr.bf16.mxu0 %v435
          %467 = vmatpush1.bf16.msra.mxu0 %v434
          %468 = vmatprep.subr.bf16.mxu0 0
          %469 = vmatpush1.bf16.msra.mxu0 0
          %470 = vmatprep.subr.bf16.mxu0 0
          %471 = vmatpush1.bf16.msra.mxu0 0
          %472 = vmatprep.subr.bf16.mxu0 0
          %473 = vmatpush1.bf16.msra.mxu0 0
          %474 = vmatprep.subr.bf16.mxu0 0
          %475 = vmatpush1.bf16.msra.mxu0 0
          %476 = vmatprep.subr.bf16.mxu0 0
          %477 = vmatpush1.bf16.msra.mxu0 0
          %478 = vmatprep.subr.bf16.mxu0 0
          %479 = vmatpush1.bf16.msra.mxu0 0
          %480 = vmatprep.subr.bf16.mxu0 0
          %481 = vmatpush1.bf16.msra.mxu0 0
          %482 = vmatprep.subr.bf16.mxu0 0
          %483 = vmatpush1.bf16.msra.mxu0 0
          %484 = vmatprep.mubr.bf16.mxu0 0
          %485 = vmatmul.mubr.bf16.gmra.mrb[0].mxu0 %v370
          %v486 = vpop.f32.mrb[0].mxu0
          %v487 = vadd.f32 0.0, %v486
          %v488 = vpop.f32.mrb[0].mxu0
          %v489 = vadd.f32 0.0, %v488
          %v490 = vpop.f32.mrb[0].mxu0
          %v491 = vadd.f32 0.0, %v490
          %v492 = vpop.f32.mrb[0].mxu0
          %v493 = vadd.f32 0.0, %v492
          %494 = vdwg.mxu0
          %v495 = vld [vmem:[#allocation3] sm:$0x3]
          %v496 = vadd.f32 %v487, %v491
          %v497 = vrot.slane %v496, 4
          %v498 = vadd.f32 %v496, %v497
          %v499 = vrot.slane %v498, 2
          %v500 = vadd.f32 %v498, %v499
          %v501 = vrot.slane %v500, 1
          %v502 = vadd.f32 %v500, %v501
          %v503 = vadd.f32 %v489, %v493
          %v504 = vrot.slane %v503, 4
          %v505 = vadd.f32 %v503, %v504
          %v506 = vrot.slane %v505, 2
          %v507 = vadd.f32 %v505, %v506
          %v508 = vrot.slane %v507, 1
          %v509 = vadd.f32 %v507, %v508
          %v512 = vcombine.low %v502, %v509
          %v514 = vunpack.c.l.s4 1966171168
          %v515 = vunpack.c.0.s8 %v514
          %v516 = vlaneseq
          %v517 = vshrl.u32 %v516, 7
          %v518 = vsub.s32 %v515, %v517
          %v519 = vrot.slane %v512, %v518
          %v521 = vunpack.c.l.s4 1966171168
          %v522 = vunpack.c.0.s8 %v521
          %v523 = vlaneseq
          %v524 = vshrl.u32 %v523, 7
          %v525 = vsub.s32 %v522, %v524
          %v526 = vrot.slane %v519, %v525
          %v528 = vadd.f32 %v495, %v526
          %v529 = vlaneseq
          %vm530 = vcmp.ge.s32.totalorder %v529, 0
          %vm531 = vcmp.lt.s32.totalorder %v529, 256
          %vm532 = vmand %vm530, %vm531
          %533 = vst.msk [vmem:[#allocation3] sm:$0x3] %vm532, %v528
          %v534 = vld [vmem:[#allocation4] sm:$0x3]
          %v535 = vmul.f32 %v487, %v487
          %v536 = vmul.f32 %v489, %v489
          %v537 = vmul.f32 %v491, %v491
          %v538 = vmul.f32 %v493, %v493
          %v539 = vadd.f32 %v535, %v537
          %v540 = vrot.slane %v539, 4
          %v541 = vadd.f32 %v539, %v540
          %v542 = vrot.slane %v541, 2
          %v543 = vadd.f32 %v541, %v542
          %v544 = vrot.slane %v543, 1
          %v545 = vadd.f32 %v543, %v544
          %v546 = vadd.f32 %v536, %v538
          %v547 = vrot.slane %v546, 4
          %v548 = vadd.f32 %v546, %v547
          %v549 = vrot.slane %v548, 2
          %v550 = vadd.f32 %v548, %v549
          %v551 = vrot.slane %v550, 1
          %v552 = vadd.f32 %v550, %v551
          %v555 = vcombine.low %v545, %v552
          %v557 = vunpack.c.l.s4 1966171168
          %v558 = vunpack.c.0.s8 %v557
          %v559 = vlaneseq
          %v560 = vshrl.u32 %v559, 7
          %v561 = vsub.s32 %v558, %v560
          %v562 = vrot.slane %v555, %v561
          %v564 = vunpack.c.l.s4 1966171168
          %v565 = vunpack.c.0.s8 %v564
          %v566 = vlaneseq
          %v567 = vshrl.u32 %v566, 7
          %v568 = vsub.s32 %v565, %v567
          %v569 = vrot.slane %v562, %v568
          %v571 = vadd.f32 %v534, %v569
          %572 = vst.msk [vmem:[#allocation4] sm:$0x3] %vm532, %v571
          %v573 = vpack.c.bf16 %v491, %v487
          %v574 = vpack.c.bf16 %v493, %v489
          %s575 = sshra.s32 %s333, 4
          %s576 = sand.u32 %s333, 15
          %s577 = smul.u32 %s575, 2
          %s578 = smul.addr %s577, 8
          %s579 = scalar_lea.vmem [#allocation2], %s578
          %580 = vst [vmem:[%s579] sm:$0xff] %v573
          %581 = vst [vmem:[%s579 + $0x8] sm:$0xff] %v574
        $region60: #{tpu_custom_call.1} parent=43 // pred_fallthru
          _
        %p582 = scmp.eq.s32.totalorder %s28, 1
        // Predicated region
        $region65: #{tpu_custom_call.1} parent=43 // pred_check
          %p583 = pneg %p582
        $region66: #{tpu_custom_call.1} parent=43 // pred_check_branch
          %585 = sbr.rel (%p583) target = $region68
        $region67: #{tpu_custom_call.1} parent=43 // pred_region
          %p586 = scmp.eq.s32.totalorder %s29, 0
          // Predicated region
          $region69: #{tpu_custom_call.1} parent=67 // pred_check
            %p587 = pneg %p586
          $region70: #{tpu_custom_call.1} parent=67 // pred_check_branch
            %589 = sbr.rel (%p587) target = $region72
          $region71: #{tpu_custom_call.1} parent=67 // pred_region
            %v590 = vld [vmem:[#allocation3] sm:$0x3]
            %v591 = vmul.f32 %v590, 0.015625
            %v592 = vld [vmem:[#allocation4] sm:$0x3]
            %v593 = vmul.f32 %v592, 0.015625
            %v594 = vmul.f32 %v591, %v591
            %v595 = vsub.f32 %v593, %v594
            %v596 = vld [vmem:[%s2] sm:$0x3]
            %v597 = vadd.f32 %v595, 1e-05
            %v598 = vrsqrt.pop %v597
            %v599 = vmul.f32 %v596, %v598
            %v600 = vlaneseq
            %vm601 = vcmp.ge.s32.totalorder %v600, 0
            %vm602 = vcmp.lt.s32.totalorder %v600, 256
            %vm603 = vmand %vm601, %vm602
            %604 = vst.msk [vmem:[#allocation5] sm:$0x3] %vm603, %v599
            %v605 = vld [vmem:[%s3] sm:$0x3]
            %v606 = vmul.f32 %v591, %v599
            %v607 = vsub.f32 %v605, %v606
            %608 = vst.msk [vmem:[#allocation6] sm:$0x3] %vm603, %v607
          $region72: #{tpu_custom_call.1} parent=67 // pred_fallthru
            _
          %s609 = sshra.s32 %s333, 4
          %s610 = sand.u32 %s333, 15
          %s611 = smul.u32 %s609, 2
          %s612 = smul.addr %s611, 8
          %s613 = scalar_lea.vmem [#allocation2], %s612
          %v614 = vld [vmem:[%s613] sm:$0xff]
          %v615 = vld [vmem:[%s613 + $0x8] sm:$0xff]
          %v616 = vunpack.c.l.bf16 %v614
          %v617 = vunpack.c.l.bf16 %v615
          %v618 = vunpack.c.h.bf16 %v614
          %v619 = vunpack.c.h.bf16 %v615
          %v620 = vld [vmem:[#allocation5] sm:$0x3]
          %v622 = vlaneseq
          %v623 = vshrl.u32 %v622, 7
          %v624 = vsub.s32 0, %v623
          %v625 = vrot.slane %v620, %v624
          %v626 = vlaneseq
          %v627 = vshrl.u32 %v626, 7
          %v628 = vsub.s32 1, %v627
          %v629 = vrot.slane %v620, %v628
          %v632 = vmul.f32 %v616, %v625
          %v633 = vmul.f32 %v617, %v629
          %v634 = vmul.f32 %v618, %v625
          %v635 = vmul.f32 %v619, %v629
          %v636 = vld [vmem:[#allocation6] sm:$0x3]
          %v638 = vlaneseq
          %v639 = vshrl.u32 %v638, 7
          %v640 = vsub.s32 0, %v639
          %v641 = vrot.slane %v636, %v640
          %v642 = vlaneseq
          %v643 = vshrl.u32 %v642, 7
          %v644 = vsub.s32 1, %v643
          %v645 = vrot.slane %v636, %v644
          %v648 = vadd.f32 %v632, %v641
          %v649 = vadd.f32 %v633, %v645
          %v650 = vadd.f32 %v634, %v641
          %v651 = vadd.f32 %v635, %v645
          %v652 = vmax.f32 %v648, 0.0
          %v653 = vmax.f32 %v649, 0.0
          %v654 = vmax.f32 %v650, 0.0
          %v655 = vmax.f32 %v651, 0.0
          %v656 = vpack.c.bf16 %v654, %v652
          %v657 = vpack.c.bf16 %v655, %v653
          %v658 = vld [vmem:[#allocation12] sm:$0xf]
          %v659 = vld [vmem:[#allocation12 + $0x4] sm:$0xf]
          %v660 = vld [vmem:[#allocation12 + $0x8] sm:$0xf]
          %v661 = vld [vmem:[#allocation12 + $0xc] sm:$0xf]
          %v662 = vld [vmem:[#allocation12 + $0x10] sm:$0xf]
          %v663 = vld [vmem:[#allocation12 + $0x14] sm:$0xf]
          %v664 = vld [vmem:[#allocation12 + $0x18] sm:$0xf]
          %v665 = vld [vmem:[#allocation12 + $0x1c] sm:$0xf]
          %v666 = vld [vmem:[#allocation12 + $0x20] sm:$0xf]
          %v667 = vld [vmem:[#allocation12 + $0x24] sm:$0xf]
          %v668 = vld [vmem:[#allocation12 + $0x28] sm:$0xf]
          %v669 = vld [vmem:[#allocation12 + $0x2c] sm:$0xf]
          %v670 = vld [vmem:[#allocation12 + $0x30] sm:$0xf]
          %v671 = vld [vmem:[#allocation12 + $0x34] sm:$0xf]
          %v672 = vld [vmem:[#allocation12 + $0x38] sm:$0xf]
          %v673 = vld [vmem:[#allocation12 + $0x3c] sm:$0xf]
          %v674 = vld [vmem:[#allocation12 + $0x40] sm:$0xf]
          %v675 = vld [vmem:[#allocation12 + $0x44] sm:$0xf]
          %v676 = vld [vmem:[#allocation12 + $0x48] sm:$0xf]
          %v677 = vld [vmem:[#allocation12 + $0x4c] sm:$0xf]
          %v678 = vld [vmem:[#allocation12 + $0x50] sm:$0xf]
          %v679 = vld [vmem:[#allocation12 + $0x54] sm:$0xf]
          %v680 = vld [vmem:[#allocation12 + $0x58] sm:$0xf]
          %v681 = vld [vmem:[#allocation12 + $0x5c] sm:$0xf]
          %v682 = vld [vmem:[#allocation12 + $0x60] sm:$0xf]
          %v683 = vld [vmem:[#allocation12 + $0x64] sm:$0xf]
          %v684 = vld [vmem:[#allocation12 + $0x68] sm:$0xf]
          %v685 = vld [vmem:[#allocation12 + $0x6c] sm:$0xf]
          %v686 = vld [vmem:[#allocation12 + $0x70] sm:$0xf]
          %v687 = vld [vmem:[#allocation12 + $0x74] sm:$0xf]
          %v688 = vld [vmem:[#allocation12 + $0x78] sm:$0xf]
          %v689 = vld [vmem:[#allocation12 + $0x7c] sm:$0xf]
          %v690 = vld [vmem:[%s5] sm:$0x1]
          %v692 = vlaneseq
          %v693 = vshrl.u32 %v692, 7
          %v694 = vsub.s32 0, %v693
          %v695 = vrot.slane %v690, %v694
          %v729 = vunpack.c.l.b16 %v658
          %v730 = vunpack.c.l.b16 %v659
          %v731 = vunpack.c.l.b16 %v660
          %v732 = vunpack.c.l.b16 %v661
          %v733 = vunpack.c.l.b16 %v662
          %v734 = vunpack.c.l.b16 %v663
          %v735 = vunpack.c.l.b16 %v664
          %v736 = vunpack.c.l.b16 %v665
          %v737 = vunpack.c.l.b16 %v666
          %v738 = vunpack.c.l.b16 %v667
          %v739 = vunpack.c.l.b16 %v668
          %v740 = vunpack.c.l.b16 %v669
          %v741 = vunpack.c.l.b16 %v670
          %v742 = vunpack.c.l.b16 %v671
          %v743 = vunpack.c.l.b16 %v672
          %v744 = vunpack.c.l.b16 %v673
          %v745 = vunpack.c.l.b16 %v674
          %v746 = vunpack.c.l.b16 %v675
          %v747 = vunpack.c.l.b16 %v676
          %v748 = vunpack.c.l.b16 %v677
          %v749 = vunpack.c.l.b16 %v678
          %v750 = vunpack.c.l.b16 %v679
          %v751 = vunpack.c.l.b16 %v680
          %v752 = vunpack.c.l.b16 %v681
          %v753 = vunpack.c.l.b16 %v682
          %v754 = vunpack.c.l.b16 %v683
          %v755 = vunpack.c.l.b16 %v684
          %v756 = vunpack.c.l.b16 %v685
          %v757 = vunpack.c.l.b16 %v686
          %v758 = vunpack.c.l.b16 %v687
          %v759 = vunpack.c.l.b16 %v688
          %v760 = vunpack.c.l.b16 %v689
          %v761 = vpack.c.b16 %v730, %v729
          %v762 = vpack.c.b16 %v732, %v731
          %v763 = vpack.c.b16 %v734, %v733
          %v764 = vpack.c.b16 %v736, %v735
          %v765 = vpack.c.b16 %v738, %v737
          %v766 = vpack.c.b16 %v740, %v739
          %v767 = vpack.c.b16 %v742, %v741
          %v768 = vpack.c.b16 %v744, %v743
          %v769 = vpack.c.b16 %v746, %v745
          %v770 = vpack.c.b16 %v748, %v747
          %v771 = vpack.c.b16 %v750, %v749
          %v772 = vpack.c.b16 %v752, %v751
          %v773 = vpack.c.b16 %v754, %v753
          %v774 = vpack.c.b16 %v756, %v755
          %v775 = vpack.c.b16 %v758, %v757
          %v776 = vpack.c.b16 %v760, %v759
          %793 = vmatprep.subr.bf16.mxu0 0
          %794 = vmatpush1.bf16.msra.mxu0 %v761
          %795 = vmatprep.subr.bf16.mxu0 0
          %796 = vmatpush1.bf16.msra.mxu0 %v762
          %797 = vmatprep.subr.bf16.mxu0 0
          %798 = vmatpush1.bf16.msra.mxu0 %v763
          %799 = vmatprep.subr.bf16.mxu0 0
          %800 = vmatpush1.bf16.msra.mxu0 %v764
          %801 = vmatprep.subr.bf16.mxu0 0
          %802 = vmatpush1.bf16.msra.mxu0 %v765
          %803 = vmatprep.subr.bf16.mxu0 0
          %804 = vmatpush1.bf16.msra.mxu0 %v766
          %805 = vmatprep.subr.bf16.mxu0 0
          %806 = vmatpush1.bf16.msra.mxu0 %v767
          %807 = vmatprep.subr.bf16.mxu0 0
          %808 = vmatpush1.bf16.msra.mxu0 %v768
          %809 = vmatprep.subr.bf16.mxu0 0
          %810 = vmatpush1.bf16.msra.mxu0 %v769
          %811 = vmatprep.subr.bf16.mxu0 0
          %812 = vmatpush1.bf16.msra.mxu0 %v770
          %813 = vmatprep.subr.bf16.mxu0 0
          %814 = vmatpush1.bf16.msra.mxu0 %v771
          %815 = vmatprep.subr.bf16.mxu0 0
          %816 = vmatpush1.bf16.msra.mxu0 %v772
          %817 = vmatprep.subr.bf16.mxu0 0
          %818 = vmatpush1.bf16.msra.mxu0 %v773
          %819 = vmatprep.subr.bf16.mxu0 0
          %820 = vmatpush1.bf16.msra.mxu0 %v774
          %821 = vmatprep.subr.bf16.mxu0 0
          %822 = vmatpush1.bf16.msra.mxu0 %v775
          %823 = vmatprep.subr.bf16.mxu0 0
          %824 = vmatpush1.bf16.msra.mxu0 %v776
          %825 = vmatprep.mubr.bf16.mxu0 %v657
          %826 = vmatmul.mubr.bf16.gmra.mrb[0].mxu0 %v656
          %v827 = vpop.f32.mrb[0].mxu0
          %v828 = vadd.f32 %v695, %v827
          %v829 = vpop.f32.mrb[0].mxu0
          %v830 = vpop.f32.mrb[0].mxu0
          %v831 = vadd.f32 %v695, %v830
          %v832 = vpop.f32.mrb[0].mxu0
          %833 = vdwg.mxu0
          %834 = vst [vmem:[%s324] sm:$0xff] %v828
          %835 = vst [vmem:[%s324 + $0x8] sm:$0xff] %v831
        $region68: #{tpu_custom_call.1} parent=43 // pred_fallthru
          _
        %s836 = sand.u32 %s185, 1
        %s837 = scalar_lea.sflag [#allocation9], %s836
        %s838 = sand.u32 %s185, 1
        %s839 = smul.addr %s838, 16
        %s840 = scalar_lea.vmem [#allocation13], %s839
        // Predicated region
        $region73: #{tpu_custom_call.1} parent=43 // pred_check
          %p841 = pneg %p195
        $region74: #{tpu_custom_call.1} parent=43 // pred_check_branch
          %843 = sbr.rel (%p841) target = $region76
        $region75: #{tpu_custom_call.1} parent=43 // pred_region
          %s844 = smul.u32 %s29, %s28
          %s845 = smul.u32 2, %s844
          %s847 = ssub.s32 256, 256
          %848 = vsyncadd %s837, %s847
          %s849 = smul.addr %s845, 128
          %s850 = scalar_lea.hbm %s6, %s849
          %s851 = sshll.u32 %s840, 4
          %s852 = int_to_ptr.vmem [resolvable:$true] %s851
          %857 = dma.vmem_to_hbm [thread:$0]  %s852, 256, %s850, %s837, 128, 128, 8
        $region76: #{tpu_custom_call.1} parent=43 // pred_fallthru
          _
      $region44: #{tpu_custom_call.1} parent=5 // pred_fallthru
        _
      %p858 = scmp.le.s32.totalorder 2, %s19
      // Predicated region
      $region77: #{tpu_custom_call.1} parent=5 // pred_check
        %p859 = pneg %p858
      $region78: #{tpu_custom_call.1} parent=5 // pred_check_branch
        %861 = sbr.rel (%p859) target = $region80
      $region79: #{tpu_custom_call.1} parent=5 // pred_region
        %s862 = ssub.s32 %s19, 2
        // Predicated region
        $region81: #{tpu_custom_call.1} parent=79 // pred_check
          %p863 = pneg %p201
        $region82: #{tpu_custom_call.1} parent=79 // pred_check_branch
          %865 = sbr.rel (%p863) target = $region84
        $region83: #{tpu_custom_call.1} parent=79 // pred_region
          %s866 = sand.u32 %s186, 1
          %s867 = scalar_lea.sflag [#allocation9], %s866
          %s868 = sand.u32 %s186, 1
          %s869 = smul.addr %s868, 16
          %s870 = scalar_lea.vmem [#allocation13], %s869
          %871 = dma.done %s867, 256
        $region84: #{tpu_custom_call.1} parent=79 // pred_fallthru
          _
      $region80: #{tpu_custom_call.1} parent=5 // pred_fallthru
        _
    $region6: #{tpu_custom_call.1} parent=1 // loop_footer
      %s23 = sadd.s32 1, %s19
    $region7: #{tpu_custom_call.1} parent=1 // loop_footer_branch
      %18 = sbr.rel target = $region3
    $region8: #{tpu_custom_call.1} parent=1 // loop_exit
      _
    %872 = vsyncpa [#allocation8], 1
    %s873 = scalar_lea.sflag [#allocation8], 1
    %874 = vsyncpa %s873, 1
    %875 = vsyncpa [#allocation11], 1
    %876 = vsyncpa [#allocation9], 1
    %s877 = scalar_lea.sflag [#allocation9], 1
    %878 = vsyncpa %s877, 1

// kernel: tpu_custom_call.1
$region0: #{tpu_custom_call.1}
  #allocation0 [shape = 'u32[]', space=smem, size = 0x4, offset = 0x4, fixed_abs, tag = 'smem constant byte address 0x4 - core index']
  #allocation1 [shape = 'u32[144,128]{1,0:T(1,128)}', space=vmem, size = 0x12000, scoped, tag = 'internal scratch']
  #allocation2 [shape = 'bf16[64,256]{1,0:T(16,128)(2,1)}', space=vmem, size = 0x8000, scoped, tag = 'scratch operand']
  #allocation3 [shape = 'f32[1,256]{1,0:T(1,128)}', space=vmem, size = 0x400, scoped, tag = 'scratch operand']
  #allocation4 [shape = 'f32[1,256]{1,0:T(1,128)}', space=vmem, size = 0x400, scoped, tag = 'scratch operand']
  #allocation5 [shape = 'f32[1,256]{1,0:T(1,128)}', space=vmem, size = 0x400, scoped, tag = 'scratch operand']
  #allocation6 [shape = 'f32[1,256]{1,0:T(1,128)}', space=vmem, size = 0x400, scoped, tag = 'scratch operand']
  %s0 = inlined_call_operand.hbm [shape: bf16[64,128], index: 0, kind: input, shape index: {}]
  %s1 = inlined_call_operand.hbm [shape: bf16[128,256], index: 1, kind: input, shape index: {}]
  %s2 = inlined_call_operand.vmem [shape: f32[1,256], index: 2, kind: input, shape index: {}]
  %s3 = inlined_call_operand.vmem [shape: f32[1,256], index: 3, kind: input, shape index: {}]
  %s4 = inlined_call_operand.hbm [shape: bf16[256,128], index: 4, kind: input, shape index: {}]
  %s5 = inlined_call_operand.vmem [shape: f32[1,128], index: 5, kind: input, shape index: {}]
  %s6 = inlined_call_operand.hbm [shape: f32[64,128], index: 6, kind: output, shape index: {}]
  %s7 = sld [smem:[#allocation0]]
  $region85: #{tpu_custom_call.1} parent=0
    _
  %s9 = ssub.s32 1, %s7
  %s10 = scalar_select 0, %s9, %s7
  $region1: #{tpu_custom_call.1} parent=0
    #allocation7 [shape = 'u8[8192]{0}', space=vmem, size = 0x2000, scoped, tag = 'input window, operand 0']
    #allocation8 [shape = 's32[2]{0}', space=sflag, size = 0x8, scoped, tag = 'scoped memory for tpu_custom_call.1']
    #allocation9 [shape = 's32[2]{0}', space=sflag, size = 0x8, scoped, tag = 'scoped memory for tpu_custom_call.1']
    #allocation10 [shape = 'u8[65536]{0}', space=vmem, size = 0x10000, scoped, tag = 'input window, operand 1, single buffered']
    #allocation11 [shape = 's32[1]{0}', space=sflag, size = 0x4, scoped, tag = 'scoped memory for tpu_custom_call.1']
    #allocation12 [shape = 'u8[65536]{0}', space=vmem, size = 0x10000, scoped, tag = 'input window, operand 4, single buffered']
    #allocation13 [shape = 'u8[16384]{0}', space=vmem, size = 0x4000, scoped, tag = 'output window, operand 0']
    %11 = vsyncpa [#allocation8], 0
    %s12 = scalar_lea.sflag [#allocation8], 1
    %13 = vsyncpa %s12, 0
    %14 = vsyncpa [#allocation11], 0
    %15 = vsyncpa [#allocation9], 0
    %s16 = scalar_lea.sflag [#allocation9], 1
    %17 = vsyncpa %s16, 0
    loop: start=0, step=1, limit=10
    $region2: #{tpu_custom_call.1} parent=1 // loop_pre_header
      _
    $region3: #{tpu_custom_call.1} parent=1 // loop_header
      %s19 = sphi 0, %s23
      %p20 = scmp.ge.s32.totalorder %s19, 10
      %s26 = sphi 0, %s38
      %s27 = sphi 0, %s34
      %s28 = sphi 0, %s26
      %s29 = sphi 0, %s27
      %s30 = sphi 0, %s28
      %s31 = sphi 0, %s29
      %s49 = sphi 0, %s51
      %s52 = sphi 0, %s49
      %s53 = sphi 0, %s52
      %s69 = sphi 0, %s53
      %s73 = sphi 0, %s73
      %s75 = sphi 0, %s73
      %s76 = sphi 0, %s75
      %s90 = sphi 0, %s76
      %s94 = sphi 0, %s94
      %s96 = sphi 0, %s94
      %s97 = sphi 0, %s96
      %s111 = sphi 0, %s97
      %s115 = sphi 0, %s115
      %s117 = sphi 0, %s115
      %s118 = sphi 0, %s117
      %s132 = sphi 0, %s118
      %s136 = sphi 0, %s136
      %s138 = sphi 0, %s136
      %s139 = sphi 0, %s138
      %s153 = sphi 0, %s139
      %s157 = sphi 0, %s157
      %s159 = sphi 0, %s157
      %s160 = sphi 0, %s159
      %s174 = sphi 0, %s160
      %s182 = sphi 0, %s184
      %s185 = sphi 0, %s182
      %s186 = sphi 0, %s185
      %s202 = sphi 0, %s186
    $region4: #{tpu_custom_call.1} parent=1 // loop_header_branch
      %22 = sbr.rel (%p20) target = $region8
    $region5: #{tpu_custom_call.1} parent=1 // loop_body
      %s24 = ssub.s32 %s19, 1
      %s25 = ssub.s32 %s19, 2
      %s32 = sadd.s32 1, %s27
      %p33 = scmp.ge.s32.totalorder %s32, 4
      %s34 = scalar_select %p33, 0, %s32
      %s35 = sadd.s32 1, %s26
      %s36 = scalar_select %p33, %s35, %s26
      %p37 = scmp.ge.s32.totalorder %s36, 2
      %s38 = scalar_select %p37, 0, %s36
      %s39 = ssub.s32 1, %s26
      %s40 = smul.u32 %s27, %s39
      %s41 = smul.u32 %s26, 3
      %s42 = sadd.s32 %s40, %s41
      %s43 = ssub.s32 1, %s38
      %s44 = smul.u32 %s34, %s43
      %s45 = smul.u32 %s38, 3
      %s46 = sadd.s32 %s44, %s45
      %s47 = ssub.s32 %s42, %s46
      %p48 = scmp.eq.s32.totalorder %s47, 0
      %s50 = sadd.s32 %s49, 1
      %s51 = scalar_select %p48, %s49, %s50
      %p54 = pneg %p48
      %p55 = scmp.eq.s32.totalorder %s19, 7
      %p56 = por %p54, %p55
      %p57 = scmp.ne.s32.totalorder %s49, %s52
      %p58 = scmp.eq.s32.totalorder %s19, 0
      %p59 = por %p57, %p58
      %p60 = scmp.ne.s32.totalorder %s49, %s52
      %p61 = scmp.eq.s32.totalorder %s24, 7
      %p62 = por %p60, %p61
      %p63 = scmp.ne.s32.totalorder %s52, %s53
      %p64 = scmp.eq.s32.totalorder %s24, 0
      %p65 = por %p63, %p64
      %p66 = scmp.ne.s32.totalorder %s52, %s53
      %p67 = scmp.eq.s32.totalorder %s25, 7
      %p68 = por %p66, %p67
      %p70 = scmp.ne.s32.totalorder %s53, %s69
      %p71 = scmp.eq.s32.totalorder %s25, 0
      %p72 = por %p70, %p71
      %s74 = sadd.s32 %s73, 1
      %p77 = scmp.eq.s32.totalorder %s19, 7
      %p78 = scmp.ne.s32.totalorder %s73, %s75
      %p79 = scmp.eq.s32.totalorder %s19, 0
      %p80 = por %p78, %p79
      %p81 = scmp.ne.s32.totalorder %s73, %s75
      %p82 = scmp.eq.s32.totalorder %s24, 7
      %p83 = por %p81, %p82
      %p84 = scmp.ne.s32.totalorder %s75, %s76
      %p85 = scmp.eq.s32.totalorder %s24, 0
      %p86 = por %p84, %p85
      %p87 = scmp.ne.s32.totalorder %s75, %s76
      %p88 = scmp.eq.s32.totalorder %s25, 7
      %p89 = por %p87, %p88
      %p91 = scmp.ne.s32.totalorder %s76, %s90
      %p92 = scmp.eq.s32.totalorder %s25, 0
      %p93 = por %p91, %p92
      %s95 = sadd.s32 %s94, 1
      %p98 = scmp.eq.s32.totalorder %s19, 7
      %p99 = scmp.ne.s32.totalorder %s94, %s96
      %p100 = scmp.eq.s32.totalorder %s19, 0
      %p101 = por %p99, %p100
      %p102 = scmp.ne.s32.totalorder %s94, %s96
      %p103 = scmp.eq.s32.totalorder %s24, 7
      %p104 = por %p102, %p103
      %p105 = scmp.ne.s32.totalorder %s96, %s97
      %p106 = scmp.eq.s32.totalorder %s24, 0
      %p107 = por %p105, %p106
      %p108 = scmp.ne.s32.totalorder %s96, %s97
      %p109 = scmp.eq.s32.totalorder %s25, 7
      %p110 = por %p108, %p109
      %p112 = scmp.ne.s32.totalorder %s97, %s111
      %p113 = scmp.eq.s32.totalorder %s25, 0
      %p114 = por %p112, %p113
      %s116 = sadd.s32 %s115, 1
      %p119 = scmp.eq.s32.totalorder %s19, 7
      %p120 = scmp.ne.s32.totalorder %s115, %s117
      %p121 = scmp.eq.s32.totalorder %s19, 0
      %p122 = por %p120, %p121
      %p123 = scmp.ne.s32.totalorder %s115, %s117
      %p124 = scmp.eq.s32.totalorder %s24, 7
      %p125 = por %p123, %p124
      %p126 = scmp.ne.s32.totalorder %s117, %s118
      %p127 = scmp.eq.s32.totalorder %s24, 0
      %p128 = por %p126, %p127
      %p129 = scmp.ne.s32.totalorder %s117, %s118
      %p130 = scmp.eq.s32.totalorder %s25, 7
      %p131 = por %p129, %p130
      %p133 = scmp.ne.s32.totalorder %s118, %s132
      %p134 = scmp.eq.s32.totalorder %s25, 0
      %p135 = por %p133, %p134
      %s137 = sadd.s32 %s136, 1
      %p140 = scmp.eq.s32.totalorder %s19, 7
      %p141 = scmp.ne.s32.totalorder %s136, %s138
      %p142 = scmp.eq.s32.totalorder %s19, 0
      %p143 = por %p141, %p142
      %p144 = scmp.ne.s32.totalorder %s136, %s138
      %p145 = scmp.eq.s32.totalorder %s24, 7
      %p146 = por %p144, %p145
      %p147 = scmp.ne.s32.totalorder %s138, %s139
      %p148 = scmp.eq.s32.totalorder %s24, 0
      %p149 = por %p147, %p148
      %p150 = scmp.ne.s32.totalorder %s138, %s139
      %p151 = scmp.eq.s32.totalorder %s25, 7
      %p152 = por %p150, %p151
      %p154 = scmp.ne.s32.totalorder %s139, %s153
      %p155 = scmp.eq.s32.totalorder %s25, 0
      %p156 = por %p154, %p155
      %s158 = sadd.s32 %s157, 1
      %p161 = scmp.eq.s32.totalorder %s19, 7
      %p162 = scmp.ne.s32.totalorder %s157, %s159
      %p163 = scmp.eq.s32.totalorder %s19, 0
      %p164 = por %p162, %p163
      %p165 = scmp.ne.s32.totalorder %s157, %s159
      %p166 = scmp.eq.s32.totalorder %s24, 7
      %p167 = por %p165, %p166
      %p168 = scmp.ne.s32.totalorder %s159, %s160
      %p169 = scmp.eq.s32.totalorder %s24, 0
      %p170 = por %p168, %p169
      %p171 = scmp.ne.s32.totalorder %s159, %s160
      %p172 = scmp.eq.s32.totalorder %s25, 7
      %p173 = por %p171, %p172
      %p175 = scmp.ne.s32.totalorder %s160, %s174
      %p176 = scmp.eq.s32.totalorder %s25, 0
      %p177 = por %p175, %p176
      %s178 = smul.u32 %s27, %s26
      %s179 = smul.u32 %s34, %s38
      %s180 = ssub.s32 %s178, %s179
      %p181 = scmp.eq.s32.totalorder %s180, 0
      %s183 = sadd.s32 %s182, 1
      %s184 = scalar_select %p181, %s182, %s183
      %p187 = pneg %p181
      %p188 = scmp.eq.s32.totalorder %s19, 7
      %p189 = por %p187, %p188
      %p190 = scmp.ne.s32.totalorder %s182, %s185
      %p191 = scmp.eq.s32.totalorder %s19, 0
      %p192 = por %p190, %p191
      %p193 = scmp.ne.s32.totalorder %s182, %s185
      %p194 = scmp.eq.s32.totalorder %s24, 7
      %p195 = por %p193, %p194
      %p196 = scmp.ne.s32.totalorder %s185, %s186
      %p197 = scmp.eq.s32.totalorder %s24, 0
      %p198 = por %p196, %p197
      %p199 = scmp.ne.s32.totalorder %s185, %s186
      %p200 = scmp.eq.s32.totalorder %s25, 7
      %p201 = por %p199, %p200
      %p203 = scmp.ne.s32.totalorder %s186, %s202
      %p204 = scmp.eq.s32.totalorder %s25, 0
      %p205 = por %p203, %p204
      %p206 = scmp.le.s32.totalorder 1, %s19
      %p207 = scmp.lt.s32.totalorder %s19, 9
      %p208 = pnand %p206, %p207
      %p209 = pneg %p208
      // Predicated region
      $region9: #{tpu_custom_call.1} parent=5 // pred_check
        _
      $region10: #{tpu_custom_call.1} parent=5 // pred_check_branch
        %211 = sbr.rel (%p208) target = $region12
      $region11: #{tpu_custom_call.1} parent=5 // pred_region
        %s212 = ssub.s32 %s19, 1
        // Predicated region
        $region13: #{tpu_custom_call.1} parent=11 // pred_check
          %p213 = pneg %p86
        $region14: #{tpu_custom_call.1} parent=11 // pred_check_branch
          %215 = sbr.rel (%p213) target = $region16
        $region15: #{tpu_custom_call.1} parent=11 // pred_region
          %s217 = ssub.s32 2048, 2048
          %218 = vsyncadd [#allocation11], %s217
          %s219 = sshll.u32 [#allocation10], 4
          %s220 = int_to_ptr.vmem [resolvable:$true] %s219
          %225 = dma.hbm_to_vmem [thread:$0]  %s1, 2048, %s220, [#allocation11], 128, 128, 8
        $region16: #{tpu_custom_call.1} parent=11 // pred_fallthru
          _
        // Predicated region
        $region17: #{tpu_custom_call.1} parent=11 // pred_check
          %p226 = pneg %p107
        $region18: #{tpu_custom_call.1} parent=11 // pred_check_branch
          %228 = sbr.rel (%p226) target = $region20
        $region19: #{tpu_custom_call.1} parent=11 // pred_region
          _
        $region20: #{tpu_custom_call.1} parent=11 // pred_fallthru
          _
        // Predicated region
        $region21: #{tpu_custom_call.1} parent=11 // pred_check
          %p229 = pneg %p128
        $region22: #{tpu_custom_call.1} parent=11 // pred_check_branch
          %231 = sbr.rel (%p229) target = $region24
        $region23: #{tpu_custom_call.1} parent=11 // pred_region
          _
        $region24: #{tpu_custom_call.1} parent=11 // pred_fallthru
          _
        // Predicated region
        $region25: #{tpu_custom_call.1} parent=11 // pred_check
          %p232 = pneg %p149
        $region26: #{tpu_custom_call.1} parent=11 // pred_check_branch
          %234 = sbr.rel (%p232) target = $region28
        $region27: #{tpu_custom_call.1} parent=11 // pred_region
          %s236 = ssub.s32 2048, 2048
          %237 = vsyncadd [#allocation11], %s236
          %s238 = sshll.u32 [#allocation12], 4
          %s239 = int_to_ptr.vmem [resolvable:$true] %s238
          %244 = dma.hbm_to_vmem [thread:$0]  %s4, 2048, %s239, [#allocation11], 64, 64, 4
        $region28: #{tpu_custom_call.1} parent=11 // pred_fallthru
          _
        // Predicated region
        $region29: #{tpu_custom_call.1} parent=11 // pred_check
          %p245 = pneg %p170
        $region30: #{tpu_custom_call.1} parent=11 // pred_check_branch
          %247 = sbr.rel (%p245) target = $region32
        $region31: #{tpu_custom_call.1} parent=11 // pred_region
          _
        $region32: #{tpu_custom_call.1} parent=11 // pred_fallthru
          _
      $region12: #{tpu_custom_call.1} parent=5 // pred_fallthru
        _
      %p248 = scmp.lt.s32.totalorder %s19, 8
      // Predicated region
      $region33: #{tpu_custom_call.1} parent=5 // pred_check
        %p249 = pneg %p248
      $region34: #{tpu_custom_call.1} parent=5 // pred_check_branch
        %251 = sbr.rel (%p249) target = $region36
      $region35: #{tpu_custom_call.1} parent=5 // pred_region
        // Predicated region
        $region37: #{tpu_custom_call.1} parent=35 // pred_check
          %p252 = pneg %p59
        $region38: #{tpu_custom_call.1} parent=35 // pred_check_branch
          %254 = sbr.rel (%p252) target = $region40
        $region39: #{tpu_custom_call.1} parent=35 // pred_region
          %s255 = sand.u32 %s49, 1
          %s256 = scalar_lea.sflag [#allocation8], %s255
          %s257 = sand.u32 %s49, 1
          %s258 = smul.addr %s257, 8
          %s259 = scalar_lea.vmem [#allocation7], %s258
          %s260 = ssub.s32 1, %s26
          %s261 = smul.u32 %s27, %s260
          %s262 = smul.u32 %s26, 3
          %s263 = sadd.s32 %s261, %s262
          %s264 = smul.u32 2, %s263
          %s266 = ssub.s32 128, 128
          %267 = vsyncadd %s256, %s266
          %s268 = smul.addr %s264, 64
          %s269 = scalar_lea.hbm %s0, %s268
          %s270 = sshll.u32 %s259, 4
          %s271 = int_to_ptr.vmem [resolvable:$true] %s270
          %276 = dma.hbm_to_vmem [thread:$0]  %s269, 128, %s271, %s256, 64, 64, 4
        $region40: #{tpu_custom_call.1} parent=35 // pred_fallthru
          _
      $region36: #{tpu_custom_call.1} parent=5 // pred_fallthru
        _
      %p277 = scmp.le.s32.totalorder 1, %s19
      %p278 = scmp.lt.s32.totalorder %s19, 9
      %p279 = pnand %p277, %p278
      %p280 = pneg %p279
      // Predicated region
      $region41: #{tpu_custom_call.1} parent=5 // pred_check
        _
      $region42: #{tpu_custom_call.1} parent=5 // pred_check_branch
        %282 = sbr.rel (%p279) target = $region44
      $region43: #{tpu_custom_call.1} parent=5 // pred_region
        %s283 = ssub.s32 %s19, 1
        %s284 = sand.u32 %s52, 1
        %s285 = scalar_lea.sflag [#allocation8], %s284
        %s286 = sand.u32 %s52, 1
        %s287 = smul.addr %s286, 8
        %s288 = scalar_lea.vmem [#allocation7], %s287
        // Predicated region
        $region45: #{tpu_custom_call.1} parent=43 // pred_check
          %p289 = pneg %p65
        $region46: #{tpu_custom_call.1} parent=43 // pred_check_branch
          %291 = sbr.rel (%p289) target = $region48
        $region47: #{tpu_custom_call.1} parent=43 // pred_region
          %292 = dma.done %s285, 128
        $region48: #{tpu_custom_call.1} parent=43 // pred_fallthru
          _
        // Predicated region
        $region49: #{tpu_custom_call.1} parent=43 // pred_check
          %p293 = pneg %p86
        $region50: #{tpu_custom_call.1} parent=43 // pred_check_branch
          %295 = sbr.rel (%p293) target = $region52
        $region51: #{tpu_custom_call.1} parent=43 // pred_region
          %296 = dma.done [#allocation11], 2048
        $region52: #{tpu_custom_call.1} parent=43 // pred_fallthru
          _
        // Predicated region
        $region53: #{tpu_custom_call.1} parent=43 // pred_check
          %p297 = pneg %p149
        $region54: #{tpu_custom_call.1} parent=43 // pred_check_branch
          %299 = sbr.rel (%p297) target = $region56
        $region55: #{tpu_custom_call.1} parent=43 // pred_region
          %300 = dma.done [#allocation11], 2048
        $region56: #{tpu_custom_call.1} parent=43 // pred_fallthru
          _
        %s301 = sand.u32 %s52, 1
        %s302 = scalar_lea.sflag [#allocation8], %s301
        %s303 = sand.u32 %s52, 1
        %s304 = smul.addr %s303, 8
        %s305 = scalar_lea.vmem [#allocation7], %s304
        %p306 = pneg %p65
        %p307 = pneg %p62
        %p308 = pneg %p86
        %p309 = pneg %p83
        %p310 = pneg %p107
        %p311 = pneg %p104
        %p312 = pneg %p128
        %p313 = pneg %p125
        %p314 = pneg %p149
        %p315 = pneg %p146
        %p316 = pneg %p170
        %p317 = pneg %p167
        %p318 = pneg %p198
        %p319 = pneg %p195
        %s320 = sand.u32 %s185, 1
        %s321 = scalar_lea.sflag [#allocation9], %s320
        %s322 = sand.u32 %s185, 1
        %s323 = smul.addr %s322, 16
        %s324 = scalar_lea.vmem [#allocation13], %s323
        %s325 = ssub.s32 1, %s28
        %s326 = smul.u32 %s29, %s325
        %s327 = smul.u32 %s28, 3
        %s328 = sadd.s32 %s326, %s327
        %s329 = smul.u32 2, %s328
        %s330 = smul.u32 %s29, %s28
        %s331 = smul.u32 2, %s330
        %s333 = smul.u32 %s29, 16
        %p334 = scmp.eq.s32.totalorder %s28, 0
        // Predicated region
        $region57: #{tpu_custom_call.1} parent=43 // pred_check
          %p335 = pneg %p334
        $region58: #{tpu_custom_call.1} parent=43 // pred_check_branch
          %337 = sbr.rel (%p335) target = $region60
        $region59: #{tpu_custom_call.1} parent=43 // pred_region
          %p338 = scmp.eq.s32.totalorder %s29, 0
          // Predicated region
          $region61: #{tpu_custom_call.1} parent=59 // pred_check
            %p339 = pneg %p338
          $region62: #{tpu_custom_call.1} parent=59 // pred_check_branch
            %341 = sbr.rel (%p339) target = $region64
          $region63: #{tpu_custom_call.1} parent=59 // pred_region
            %v342 = vlaneseq
            %vm343 = vcmp.ge.s32.totalorder %v342, 0
            %vm344 = vcmp.lt.s32.totalorder %v342, 256
            %vm345 = vmand %vm343, %vm344
            %346 = vst.msk [vmem:[#allocation3] sm:$0x3] %vm345, 0.0
            %347 = vst.msk [vmem:[#allocation4] sm:$0x3] %vm345, 0.0
          $region64: #{tpu_custom_call.1} parent=59 // pred_fallthru
            _
          %v348 = vld [vmem:[%s288] sm:$0xf]
          %v349 = vld [vmem:[%s288 + $0x4] sm:$0xf]
          %v350 = vld [vmem:[#allocation10] sm:$0xff]
          %v351 = vld [vmem:[#allocation10 + $0x8] sm:$0xff]
          %v352 = vld [vmem:[#allocation10 + $0x10] sm:$0xff]
          %v353 = vld [vmem:[#allocation10 + $0x18] sm:$0xff]
          %v354 = vld [vmem:[#allocation10 + $0x20] sm:$0xff]
          %v355 = vld [vmem:[#allocation10 + $0x28] sm:$0xff]
          %v356 = vld [vmem:[#allocation10 + $0x30] sm:$0xff]
          %v357 = vld [vmem:[#allocation10 + $0x38] sm:$0xff]
          %v358 = vld [vmem:[#allocation10 + $0x40] sm:$0xff]
          %v359 = vld [vmem:[#allocation10 + $0x48] sm:$0xff]
          %v360 = vld [vmem:[#allocation10 + $0x50] sm:$0xff]
          %v361 = vld [vmem:[#allocation10 + $0x58] sm:$0xff]
          %v362 = vld [vmem:[#allocation10 + $0x60] sm:$0xff]
          %v363 = vld [vmem:[#allocation10 + $0x68] sm:$0xff]
          %v364 = vld [vmem:[#allocation10 + $0x70] sm:$0xff]
          %v365 = vld [vmem:[#allocation10 + $0x78] sm:$0xff]
          %v368 = vunpack.c.l.b16 %v348
          %v369 = vunpack.c.l.b16 %v349
          %v370 = vpack.c.b16 %v369, %v368
          %v388 = vunpack.c.l.b16 %v350
          %v389 = vunpack.c.h.b16 %v350
          %v390 = vunpack.c.l.b16 %v351
          %v391 = vunpack.c.h.b16 %v351
          %v392 = vunpack.c.l.b16 %v352
          %v393 = vunpack.c.h.b16 %v352
          %v394 = vunpack.c.l.b16 %v353
          %v395 = vunpack.c.h.b16 %v353
          %v396 = vunpack.c.l.b16 %v354
          %v397 = vunpack.c.h.b16 %v354
          %v398 = vunpack.c.l.b16 %v355
          %v399 = vunpack.c.h.b16 %v355
          %v400 = vunpack.c.l.b16 %v356
          %v401 = vunpack.c.h.b16 %v356
          %v402 = vunpack.c.l.b16 %v357
          %v403 = vunpack.c.h.b16 %v357
          %v404 = vunpack.c.l.b16 %v358
          %v405 = vunpack.c.h.b16 %v358
          %v406 = vunpack.c.l.b16 %v359
          %v407 = vunpack.c.h.b16 %v359
          %v408 = vunpack.c.l.b16 %v360
          %v409 = vunpack.c.h.b16 %v360
          %v410 = vunpack.c.l.b16 %v361
          %v411 = vunpack.c.h.b16 %v361
          %v412 = vunpack.c.l.b16 %v362
          %v413 = vunpack.c.h.b16 %v362
          %v414 = vunpack.c.l.b16 %v363
          %v415 = vunpack.c.h.b16 %v363
          %v416 = vunpack.c.l.b16 %v364
          %v417 = vunpack.c.h.b16 %v364
          %v418 = vunpack.c.l.b16 %v365
          %v419 = vunpack.c.h.b16 %v365
          %v420 = vpack.c.b16 %v390, %v388
          %v421 = vpack.c.b16 %v391, %v389
          %v422 = vpack.c.b16 %v394, %v392
          %v423 = vpack.c.b16 %v395, %v393
          %v424 = vpack.c.b16 %v398, %v396
          %v425 = vpack.c.b16 %v399, %v397
          %v426 = vpack.c.b16 %v402, %v400
          %v427 = vpack.c.b16 %v403, %v401
          %v428 = vpack.c.b16 %v406, %v404
          %v429 = vpack.c.b16 %v407, %v405
          %v430 = vpack.c.b16 %v410, %v408
          %v431 = vpack.c.b16 %v411, %v409
          %v432 = vpack.c.b16 %v414, %v412
          %v433 = vpack.c.b16 %v415, %v413
          %v434 = vpack.c.b16 %v418, %v416
          %v435 = vpack.c.b16 %v419, %v417
          %452 = vmatprep.subr.bf16.mxu0 %v421
          %453 = vmatpush1.bf16.msra.mxu0 %v420
          %454 = vmatprep.subr.bf16.mxu0 %v423
          %455 = vmatpush1.bf16.msra.mxu0 %v422
          %456 = vmatprep.subr.bf16.mxu0 %v425
          %457 = vmatpush1.bf16.msra.mxu0 %v424
          %458 = vmatprep.subr.bf16.mxu0 %v427
          %459 = vmatpush1.bf16.msra.mxu0 %v426
          %460 = vmatprep.subr.bf16.mxu0 %v429
          %461 = vmatpush1.bf16.msra.mxu0 %v428
          %462 = vmatprep.subr.bf16.mxu0 %v431
          %463 = vmatpush1.bf16.msra.mxu0 %v430
          %464 = vmatprep.subr.bf16.mxu0 %v433
          %465 = vmatpush1.bf16.msra.mxu0 %v432
          %466 = vmatprep.subr.bf16.mxu0 %v435
          %467 = vmatpush1.bf16.msra.mxu0 %v434
          %468 = vmatprep.subr.bf16.mxu0 0
          %469 = vmatpush1.bf16.msra.mxu0 0
          %470 = vmatprep.subr.bf16.mxu0 0
          %471 = vmatpush1.bf16.msra.mxu0 0
          %472 = vmatprep.subr.bf16.mxu0 0
          %473 = vmatpush1.bf16.msra.mxu0 0
          %474 = vmatprep.subr.bf16.mxu0 0
          %475 = vmatpush1.bf16.msra.mxu0 0
          %476 = vmatprep.subr.bf16.mxu0 0
          %477 = vmatpush1.bf16.msra.mxu0 0
          %478 = vmatprep.subr.bf16.mxu0 0
          %479 = vmatpush1.bf16.msra.mxu0 0
          %480 = vmatprep.subr.bf16.mxu0 0
          %481 = vmatpush1.bf16.msra.mxu0 0
          %482 = vmatprep.subr.bf16.mxu0 0
          %483 = vmatpush1.bf16.msra.mxu0 0
          %484 = vmatprep.mubr.bf16.mxu0 0
          %485 = vmatmul.mubr.bf16.gmra.mrb[0].mxu0 %v370
          %v486 = vpop.f32.mrb[0].mxu0
          %v487 = vadd.f32 0.0, %v486
          %v488 = vpop.f32.mrb[0].mxu0
          %v489 = vadd.f32 0.0, %v488
          %v490 = vpop.f32.mrb[0].mxu0
          %v491 = vadd.f32 0.0, %v490
          %v492 = vpop.f32.mrb[0].mxu0
          %v493 = vadd.f32 0.0, %v492
          %494 = vdwg.mxu0
          %v495 = vld [vmem:[#allocation3] sm:$0x3]
          %v496 = vadd.f32 %v487, %v491
          %v497 = vrot.slane %v496, 4
          %v498 = vadd.f32 %v496, %v497
          %v499 = vrot.slane %v498, 2
          %v500 = vadd.f32 %v498, %v499
          %v501 = vrot.slane %v500, 1
          %v502 = vadd.f32 %v500, %v501
          %v503 = vadd.f32 %v489, %v493
          %v504 = vrot.slane %v503, 4
          %v505 = vadd.f32 %v503, %v504
          %v506 = vrot.slane %v505, 2
          %v507 = vadd.f32 %v505, %v506
          %v508 = vrot.slane %v507, 1
          %v509 = vadd.f32 %v507, %v508
          %v512 = vcombine.low %v502, %v509
          %v514 = vunpack.c.l.s4 1966171168
          %v515 = vunpack.c.0.s8 %v514
          %v516 = vlaneseq
          %v517 = vshrl.u32 %v516, 7
          %v518 = vsub.s32 %v515, %v517
          %v519 = vrot.slane %v512, %v518
          %v521 = vunpack.c.l.s4 1966171168
          %v522 = vunpack.c.0.s8 %v521
          %v523 = vlaneseq
          %v524 = vshrl.u32 %v523, 7
          %v525 = vsub.s32 %v522, %v524
          %v526 = vrot.slane %v519, %v525
          %v528 = vadd.f32 %v495, %v526
          %v529 = vlaneseq
          %vm530 = vcmp.ge.s32.totalorder %v529, 0
          %vm531 = vcmp.lt.s32.totalorder %v529, 256
          %vm532 = vmand %vm530, %vm531
          %533 = vst.msk [vmem:[#allocation3] sm:$0x3] %vm532, %v528
          %v534 = vld [vmem:[#allocation4] sm:$0x3]
          %v535 = vmul.f32 %v487, %v487
          %v536 = vmul.f32 %v489, %v489
          %v537 = vmul.f32 %v491, %v491
          %v538 = vmul.f32 %v493, %v493
          %v539 = vadd.f32 %v535, %v537
          %v540 = vrot.slane %v539, 4
          %v541 = vadd.f32 %v539, %v540
          %v542 = vrot.slane %v541, 2
          %v543 = vadd.f32 %v541, %v542
          %v544 = vrot.slane %v543, 1
          %v545 = vadd.f32 %v543, %v544
          %v546 = vadd.f32 %v536, %v538
          %v547 = vrot.slane %v546, 4
          %v548 = vadd.f32 %v546, %v547
          %v549 = vrot.slane %v548, 2
          %v550 = vadd.f32 %v548, %v549
          %v551 = vrot.slane %v550, 1
          %v552 = vadd.f32 %v550, %v551
          %v555 = vcombine.low %v545, %v552
          %v557 = vunpack.c.l.s4 1966171168
          %v558 = vunpack.c.0.s8 %v557
          %v559 = vlaneseq
          %v560 = vshrl.u32 %v559, 7
          %v561 = vsub.s32 %v558, %v560
          %v562 = vrot.slane %v555, %v561
          %v564 = vunpack.c.l.s4 1966171168
          %v565 = vunpack.c.0.s8 %v564
          %v566 = vlaneseq
          %v567 = vshrl.u32 %v566, 7
          %v568 = vsub.s32 %v565, %v567
          %v569 = vrot.slane %v562, %v568
          %v571 = vadd.f32 %v534, %v569
          %572 = vst.msk [vmem:[#allocation4] sm:$0x3] %vm532, %v571
          %v573 = vpack.c.bf16 %v491, %v487
          %v574 = vpack.c.bf16 %v493, %v489
          %s575 = sshra.s32 %s333, 4
          %s576 = sand.u32 %s333, 15
          %s577 = smul.u32 %s575, 2
          %s578 = smul.addr %s577, 8
          %s579 = scalar_lea.vmem [#allocation2], %s578
          %580 = vst [vmem:[%s579] sm:$0xff] %v573
          %581 = vst [vmem:[%s579 + $0x8] sm:$0xff] %v574
        $region60: #{tpu_custom_call.1} parent=43 // pred_fallthru
          _
        %p582 = scmp.eq.s32.totalorder %s28, 1
        // Predicated region
        $region65: #{tpu_custom_call.1} parent=43 // pred_check
          %p583 = pneg %p582
        $region66: #{tpu_custom_call.1} parent=43 // pred_check_branch
          %585 = sbr.rel (%p583) target = $region68
        $region67: #{tpu_custom_call.1} parent=43 // pred_region
          %p586 = scmp.eq.s32.totalorder %s29, 0
          // Predicated region
          $region69: #{tpu_custom_call.1} parent=67 // pred_check
            %p587 = pneg %p586
          $region70: #{tpu_custom_call.1} parent=67 // pred_check_branch
            %589 = sbr.rel (%p587) target = $region72
          $region71: #{tpu_custom_call.1} parent=67 // pred_region
            %v590 = vld [vmem:[#allocation3] sm:$0x3]
            %v591 = vmul.f32 %v590, 0.015625
            %v592 = vld [vmem:[#allocation4] sm:$0x3]
            %v593 = vmul.f32 %v592, 0.015625
            %v594 = vmul.f32 %v591, %v591
            %v595 = vsub.f32 %v593, %v594
            %v596 = vld [vmem:[%s2] sm:$0x3]
            %v597 = vadd.f32 %v595, 1e-05
            %v598 = vrsqrt.pop %v597
            %v599 = vmul.f32 %v596, %v598
            %v600 = vlaneseq
            %vm601 = vcmp.ge.s32.totalorder %v600, 0
            %vm602 = vcmp.lt.s32.totalorder %v600, 256
            %vm603 = vmand %vm601, %vm602
            %604 = vst.msk [vmem:[#allocation5] sm:$0x3] %vm603, %v599
            %v605 = vld [vmem:[%s3] sm:$0x3]
            %v606 = vmul.f32 %v591, %v599
            %v607 = vsub.f32 %v605, %v606
            %608 = vst.msk [vmem:[#allocation6] sm:$0x3] %vm603, %v607
          $region72: #{tpu_custom_call.1} parent=67 // pred_fallthru
            _
          %s609 = sshra.s32 %s333, 4
          %s610 = sand.u32 %s333, 15
          %s611 = smul.u32 %s609, 2
          %s612 = smul.addr %s611, 8
          %s613 = scalar_lea.vmem [#allocation2], %s612
          %v614 = vld [vmem:[%s613] sm:$0xff]
          %v615 = vld [vmem:[%s613 + $0x8] sm:$0xff]
          %v616 = vunpack.c.l.bf16 %v614
          %v617 = vunpack.c.l.bf16 %v615
          %v618 = vunpack.c.h.bf16 %v614
          %v619 = vunpack.c.h.bf16 %v615
          %v620 = vld [vmem:[#allocation5] sm:$0x3]
          %v622 = vlaneseq
          %v623 = vshrl.u32 %v622, 7
          %v624 = vsub.s32 0, %v623
          %v625 = vrot.slane %v620, %v624
          %v626 = vlaneseq
          %v627 = vshrl.u32 %v626, 7
          %v628 = vsub.s32 1, %v627
          %v629 = vrot.slane %v620, %v628
          %v632 = vmul.f32 %v616, %v625
          %v633 = vmul.f32 %v617, %v629
          %v634 = vmul.f32 %v618, %v625
          %v635 = vmul.f32 %v619, %v629
          %v636 = vld [vmem:[#allocation6] sm:$0x3]
          %v638 = vlaneseq
          %v639 = vshrl.u32 %v638, 7
          %v640 = vsub.s32 0, %v639
          %v641 = vrot.slane %v636, %v640
          %v642 = vlaneseq
          %v643 = vshrl.u32 %v642, 7
          %v644 = vsub.s32 1, %v643
          %v645 = vrot.slane %v636, %v644
          %v648 = vadd.f32 %v632, %v641
          %v649 = vadd.f32 %v633, %v645
          %v650 = vadd.f32 %v634, %v641
          %v651 = vadd.f32 %v635, %v645
          %v652 = vmax.f32 %v648, 0.0
          %v653 = vmax.f32 %v649, 0.0
          %v654 = vmax.f32 %v650, 0.0
          %v655 = vmax.f32 %v651, 0.0
          %v656 = vpack.c.bf16 %v654, %v652
          %v657 = vpack.c.bf16 %v655, %v653
          %v658 = vld [vmem:[#allocation12] sm:$0xf]
          %v659 = vld [vmem:[#allocation12 + $0x4] sm:$0xf]
          %v660 = vld [vmem:[#allocation12 + $0x8] sm:$0xf]
          %v661 = vld [vmem:[#allocation12 + $0xc] sm:$0xf]
          %v662 = vld [vmem:[#allocation12 + $0x10] sm:$0xf]
          %v663 = vld [vmem:[#allocation12 + $0x14] sm:$0xf]
          %v664 = vld [vmem:[#allocation12 + $0x18] sm:$0xf]
          %v665 = vld [vmem:[#allocation12 + $0x1c] sm:$0xf]
          %v666 = vld [vmem:[#allocation12 + $0x20] sm:$0xf]
          %v667 = vld [vmem:[#allocation12 + $0x24] sm:$0xf]
          %v668 = vld [vmem:[#allocation12 + $0x28] sm:$0xf]
          %v669 = vld [vmem:[#allocation12 + $0x2c] sm:$0xf]
          %v670 = vld [vmem:[#allocation12 + $0x30] sm:$0xf]
          %v671 = vld [vmem:[#allocation12 + $0x34] sm:$0xf]
          %v672 = vld [vmem:[#allocation12 + $0x38] sm:$0xf]
          %v673 = vld [vmem:[#allocation12 + $0x3c] sm:$0xf]
          %v674 = vld [vmem:[#allocation12 + $0x40] sm:$0xf]
          %v675 = vld [vmem:[#allocation12 + $0x44] sm:$0xf]
          %v676 = vld [vmem:[#allocation12 + $0x48] sm:$0xf]
          %v677 = vld [vmem:[#allocation12 + $0x4c] sm:$0xf]
          %v678 = vld [vmem:[#allocation12 + $0x50] sm:$0xf]
          %v679 = vld [vmem:[#allocation12 + $0x54] sm:$0xf]
          %v680 = vld [vmem:[#allocation12 + $0x58] sm:$0xf]
          %v681 = vld [vmem:[#allocation12 + $0x5c] sm:$0xf]
          %v682 = vld [vmem:[#allocation12 + $0x60] sm:$0xf]
          %v683 = vld [vmem:[#allocation12 + $0x64] sm:$0xf]
          %v684 = vld [vmem:[#allocation12 + $0x68] sm:$0xf]
          %v685 = vld [vmem:[#allocation12 + $0x6c] sm:$0xf]
          %v686 = vld [vmem:[#allocation12 + $0x70] sm:$0xf]
          %v687 = vld [vmem:[#allocation12 + $0x74] sm:$0xf]
          %v688 = vld [vmem:[#allocation12 + $0x78] sm:$0xf]
          %v689 = vld [vmem:[#allocation12 + $0x7c] sm:$0xf]
          %v690 = vld [vmem:[%s5] sm:$0x1]
          %v692 = vlaneseq
          %v693 = vshrl.u32 %v692, 7
          %v694 = vsub.s32 0, %v693
          %v695 = vrot.slane %v690, %v694
          %v729 = vunpack.c.l.b16 %v658
          %v730 = vunpack.c.l.b16 %v659
          %v731 = vunpack.c.l.b16 %v660
          %v732 = vunpack.c.l.b16 %v661
          %v733 = vunpack.c.l.b16 %v662
          %v734 = vunpack.c.l.b16 %v663
          %v735 = vunpack.c.l.b16 %v664
          %v736 = vunpack.c.l.b16 %v665
          %v737 = vunpack.c.l.b16 %v666
          %v738 = vunpack.c.l.b16 %v667
          %v739 = vunpack.c.l.b16 %v668
          %v740 = vunpack.c.l.b16 %v669
          %v741 = vunpack.c.l.b16 %v670
          %v742 = vunpack.c.l.b16 %v671
          %v743 = vunpack.c.l.b16 %v672
          %v744 = vunpack.c.l.b16 %v673
          %v745 = vunpack.c.l.b16 %v674
          %v746 = vunpack.c.l.b16 %v675
          %v747 = vunpack.c.l.b16 %v676
          %v748 = vunpack.c.l.b16 %v677
          %v749 = vunpack.c.l.b16 %v678
          %v750 = vunpack.c.l.b16 %v679
          %v751 = vunpack.c.l.b16 %v680
          %v752 = vunpack.c.l.b16 %v681
          %v753 = vunpack.c.l.b16 %v682
          %v754 = vunpack.c.l.b16 %v683
          %v755 = vunpack.c.l.b16 %v684
          %v756 = vunpack.c.l.b16 %v685
          %v757 = vunpack.c.l.b16 %v686
          %v758 = vunpack.c.l.b16 %v687
          %v759 = vunpack.c.l.b16 %v688
          %v760 = vunpack.c.l.b16 %v689
          %v761 = vpack.c.b16 %v730, %v729
          %v762 = vpack.c.b16 %v732, %v731
          %v763 = vpack.c.b16 %v734, %v733
          %v764 = vpack.c.b16 %v736, %v735
          %v765 = vpack.c.b16 %v738, %v737
          %v766 = vpack.c.b16 %v740, %v739
          %v767 = vpack.c.b16 %v742, %v741
          %v768 = vpack.c.b16 %v744, %v743
          %v769 = vpack.c.b16 %v746, %v745
          %v770 = vpack.c.b16 %v748, %v747
          %v771 = vpack.c.b16 %v750, %v749
          %v772 = vpack.c.b16 %v752, %v751
          %v773 = vpack.c.b16 %v754, %v753
          %v774 = vpack.c.b16 %v756, %v755
          %v775 = vpack.c.b16 %v758, %v757
          %v776 = vpack.c.b16 %v760, %v759
          %793 = vmatprep.subr.bf16.mxu0 0
          %794 = vmatpush1.bf16.msra.mxu0 %v761
          %795 = vmatprep.subr.bf16.mxu0 0
          %796 = vmatpush1.bf16.msra.mxu0 %v762
          %797 = vmatprep.subr.bf16.mxu0 0
          %798 = vmatpush1.bf16.msra.mxu0 %v763
          %799 = vmatprep.subr.bf16.mxu0 0
          %800 = vmatpush1.bf16.msra.mxu0 %v764
          %801 = vmatprep.subr.bf16.mxu0 0
          %802 = vmatpush1.bf16.msra.mxu0 %v765
          %803 = vmatprep.subr.bf16.mxu0 0
          %804 = vmatpush1.bf16.msra.mxu0 %v766
          %805 = vmatprep.subr.bf16.mxu0 0
          %806 = vmatpush1.bf16.msra.mxu0 %v767
          %807 = vmatprep.subr.bf16.mxu0 0
          %808 = vmatpush1.bf16.msra.mxu0 %v768
          %809 = vmatprep.subr.bf16.mxu0 0
          %810 = vmatpush1.bf16.msra.mxu0 %v769
          %811 = vmatprep.subr.bf16.mxu0 0
          %812 = vmatpush1.bf16.msra.mxu0 %v770
          %813 = vmatprep.subr.bf16.mxu0 0
          %814 = vmatpush1.bf16.msra.mxu0 %v771
          %815 = vmatprep.subr.bf16.mxu0 0
          %816 = vmatpush1.bf16.msra.mxu0 %v772
          %817 = vmatprep.subr.bf16.mxu0 0
          %818 = vmatpush1.bf16.msra.mxu0 %v773
          %819 = vmatprep.subr.bf16.mxu0 0
          %820 = vmatpush1.bf16.msra.mxu0 %v774
          %821 = vmatprep.subr.bf16.mxu0 0
          %822 = vmatpush1.bf16.msra.mxu0 %v775
          %823 = vmatprep.subr.bf16.mxu0 0
          %824 = vmatpush1.bf16.msra.mxu0 %v776
          %825 = vmatprep.mubr.bf16.mxu0 %v657
          %826 = vmatmul.mubr.bf16.gmra.mrb[0].mxu0 %v656
          %v827 = vpop.f32.mrb[0].mxu0
          %v828 = vadd.f32 %v695, %v827
          %v829 = vpop.f32.mrb[0].mxu0
          %v830 = vpop.f32.mrb[0].mxu0
          %v831 = vadd.f32 %v695, %v830
          %v832 = vpop.f32.mrb[0].mxu0
          %833 = vdwg.mxu0
          %834 = vst [vmem:[%s324] sm:$0xff] %v828
          %835 = vst [vmem:[%s324 + $0x8] sm:$0xff] %v831
        $region68: #{tpu_custom_call.1} parent=43 // pred_fallthru
          _
        %s836 = sand.u32 %s185, 1
        %s837 = scalar_lea.sflag [#allocation9], %s836
        %s838 = sand.u32 %s185, 1
        %s839 = smul.addr %s838, 16
        %s840 = scalar_lea.vmem [#allocation13], %s839
        // Predicated region
        $region73: #{tpu_custom_call.1} parent=43 // pred_check
          %p841 = pneg %p195
        $region74: #{tpu_custom_call.1} parent=43 // pred_check_branch
          %843 = sbr.rel (%p841) target = $region76
        $region75: #{tpu_custom_call.1} parent=43 // pred_region
          %s844 = smul.u32 %s29, %s28
          %s845 = smul.u32 2, %s844
          %s847 = ssub.s32 256, 256
          %848 = vsyncadd %s837, %s847
          %s849 = smul.addr %s845, 128
          %s850 = scalar_lea.hbm %s6, %s849
          %s851 = sshll.u32 %s840, 4
          %s852 = int_to_ptr.vmem [resolvable:$true] %s851
          %857 = dma.vmem_to_hbm [thread:$0]  %s852, 256, %s850, %s837, 128, 128, 8
        $region76: #{tpu_custom_call.1} parent=43 // pred_fallthru
          _
      $region44: #{tpu_custom_call.1} parent=5 // pred_fallthru
        _
      %p858 = scmp.le.s32.totalorder 2, %s19
      // Predicated region
      $region77: #{tpu_custom_call.1} parent=5 // pred_check
        %p859 = pneg %p858
      $region78: #{tpu_custom_call.1} parent=5 // pred_check_branch
        %861 = sbr.rel (%p859) target = $region80
      $region79: #{tpu_custom_call.1} parent=5 // pred_region
        %s862 = ssub.s32 %s19, 2
        // Predicated region
        $region81: #{tpu_custom_call.1} parent=79 // pred_check
          %p863 = pneg %p201
        $region82: #{tpu_custom_call.1} parent=79 // pred_check_branch
          %865 = sbr.rel (%p863) target = $region84
        $region83: #{tpu_custom_call.1} parent=79 // pred_region
          %s866 = sand.u32 %s186, 1
          %s867 = scalar_lea.sflag [#allocation9], %s866
          %s868 = sand.u32 %s186, 1
          %s869 = smul.addr %s868, 16
          %s870 = scalar_lea.vmem [#allocation13], %s869
          %871 = dma.done %s867, 256
        $region84: #{tpu_custom_call.1} parent=79 // pred_fallthru
          _
      $region80: #{tpu_custom_call.1} parent=5 // pred_fallthru
        _
    $region6: #{tpu_custom_call.1} parent=1 // loop_footer
      %s23 = sadd.s32 1, %s19
    $region7: #{tpu_custom_call.1} parent=1 // loop_footer_branch
      %18 = sbr.rel target = $region3
    $region8: #{tpu_custom_call.1} parent=1 // loop_exit
      _
    %872 = vsyncpa [#allocation8], 1
    %s873 = scalar_lea.sflag [#allocation8], 1
    %874 = vsyncpa %s873, 1
    %875 = vsyncpa [#allocation11], 1
    %876 = vsyncpa [#allocation9], 1
    %s877 = scalar_lea.sflag [#allocation9], 1
    %878 = vsyncpa %s877, 1

</llo_original>
